<compile_context>
chip_gen: v6e
topology: v6e:2x2x1
jax: 0.10.0
libtpu: 0.0.40
codegen_flags: <defaults>
</compile_context>

<pallas_src>
import functools

import jax
import jax.numpy as jnp
from jax.experimental import pallas as pl
from jax.experimental.pallas import tpu as pltpu


def basic_conv2d_kernel(x_ref, w_ref, g_ref, beta_ref, o_ref, *, H, W, KH, KW,
                        padding):
    # x_ref:    (N, Cin, lane_pad + H*W + lane_pad)  flattened, lane-padded input
    # w_ref:    (KH*KW, Cout, Cin)                    one (Cout, Cin) matrix per tap
    # g_ref:    (Cout, 1)                             BN gamma
    # beta_ref: (Cout, 1)                             BN beta
    # o_ref:    (N, Cout, H*W)                        lane-dense output
    N, Cout, HW = o_ref.shape
    _, Cin, _ = x_ref.shape
    lane_pad = padding * (W + 1)

    w = w_ref[...]                                           # (KH*KW, Cout, Cin)
    # Column index of each flattened spatial position; used to mask taps whose
    # source column falls off the left/right image edge (the lane-axis zero
    # padding already zeroes rows that fall off the top/bottom).
    col = jax.lax.broadcasted_iota(jnp.int32, (Cin, HW), 1) % W

    accs = []
    for n in range(N):
        xz = x_ref[n]                                        # (Cin, HW + 2*lane_pad)
        acc = jnp.zeros((Cout, HW), jnp.float32)
        for kh in range(KH):
            dh = kh - padding
            for kw in range(KW):
                dw = kw - padding
                s = dh * W + dw
                # shifted[ci, h*W + w] == x[n, ci, h+dh, w+dw] (0 outside image)
                shifted = xz[:, lane_pad + s: lane_pad + s + HW]   # (Cin, HW)
                if dw == 0:
                    tap = shifted
                else:
                    valid = (col + dw >= 0) & (col + dw < W)
                    tap = jnp.where(valid, shifted, 0.0)
                acc = acc + jax.lax.dot_general(
                    w[kh * KW + kw], tap,
                    dimension_numbers=(((1,), (0,)), ((), ())),
                    preferred_element_type=jnp.float32)
        accs.append(acc)                                     # (Cout, HW) f32

    # Conv bias intentionally omitted: it is exactly cancelled by the
    # training-mode BatchNorm mean subtraction (variance unchanged).

    # BatchNorm2d training-mode batch stats: per-channel mean / biased variance
    # over N*H*W, computed as lane-axis reductions on full-width vregs.
    cnt = float(N * HW)
    mean = sum(jnp.sum(a, axis=1, keepdims=True) for a in accs) / cnt       # (Cout,1)
    var = sum(jnp.sum((a - mean) ** 2, axis=1, keepdims=True) for a in accs) / cnt
    inv = jax.lax.rsqrt(var + 1e-5)
    scale = g_ref[...] * inv                                 # (Cout, 1)
    shift = beta_ref[...] - mean * scale                     # (Cout, 1)

    for n in range(N):
        y = accs[n] * scale + shift                          # (Cout, HW)
        # LeakyReLU, negative_slope = 0.01
        o_ref[n] = jnp.where(y >= 0, y, 0.01 * y).astype(o_ref.dtype)


def basic_conv2d(x_nchw, weight_oihw, bias, gamma, beta, padding):
    """BasicConv2d.forward (conv + BN(train stats) + LeakyReLU), NCHW in/out."""
    del bias  # cancelled by training-mode BatchNorm (see kernel comment)
    N, Cin, H, W = x_nchw.shape
    Cout, _, KH, KW = weight_oihw.shape
    assert KH == KW and 2 * padding == KH - 1, "supports 'same', stride-1 convs"
    HW = H * W
    lane_pad = padding * (W + 1)

    # Free reshape (contiguous): NCHW -> (N, Cin, H*W), spatial on the lane axis.
    x_flat = x_nchw.reshape(N, Cin, HW)
    # Tiny 1-D lane pad so each conv tap is a static in-bounds lane slice.
    x_z = jnp.pad(x_flat, ((0, 0), (0, 0), (lane_pad, lane_pad)))
    # One (Cout, Cin) weight matrix per tap: w_taps[kh*KW+kw, co, ci].
    w_taps = jnp.transpose(weight_oihw, (2, 3, 0, 1)).reshape(KH * KW, Cout, Cin)
    g2 = gamma.reshape(Cout, 1)
    b2 = beta.reshape(Cout, 1)

    kernel = functools.partial(basic_conv2d_kernel, H=H, W=W, KH=KH, KW=KW,
                               padding=padding)

    out_flat = pl.pallas_call(
        kernel,
        out_shape=jax.ShapeDtypeStruct((N, Cout, HW), jnp.float32),
        grid_spec=pltpu.PrefetchScalarGridSpec(
            num_scalar_prefetch=0,
            grid=(1,),
            in_specs=[
                pl.BlockSpec((N, Cin, HW + 2 * lane_pad), lambda i: (0, 0, 0)),
                pl.BlockSpec((KH * KW, Cout, Cin), lambda i: (0, 0, 0)),
                pl.BlockSpec((Cout, 1), lambda i: (0, 0)),
                pl.BlockSpec((Cout, 1), lambda i: (0, 0)),
            ],
            out_specs=pl.BlockSpec((N, Cout, HW), lambda i: (0, 0, 0)),
        ),
        compiler_params=pltpu.CompilerParams(
            dimension_semantics=("arbitrary",)),
    )(x_z, w_taps, g2, b2)

    # Free reshape back to NCHW -- no output transpose needed.
    return out_flat.reshape(N, Cout, H, W)


def reference(x_nchw, weight_oihw, bias, gamma, beta, padding):
    y = jax.lax.conv_general_dilated(
        x_nchw, weight_oihw, window_strides=(1, 1),
        padding=((padding, padding), (padding, padding)),
        dimension_numbers=("NCHW", "OIHW", "NCHW"))
    y = y + bias[None, :, None, None]
    mean = y.mean(axis=(0, 2, 3), keepdims=True)
    var = ((y - mean) ** 2).mean(axis=(0, 2, 3), keepdims=True)
    yn = (y - mean) * jax.lax.rsqrt(var + 1e-5)
    yn = yn * gamma[None, :, None, None] + beta[None, :, None, None]
    return jnp.where(yn >= 0, yn, 0.01 * yn)


if __name__ == "__main__":
    # BasicConv2d(in_channels=4, out_channels=8, kernel_size=3, padding=1)
    N, Cin, H, W = 2, 4, 16, 16
    Cout, KH, KW, pad = 8, 3, 3, 1

    key = jax.random.PRNGKey(0)
    kx, kw, kb, kg, kbt = jax.random.split(key, 5)

    x = jax.random.normal(kx, (N, Cin, H, W), jnp.float32)
    fan_in = Cin * KH * KW
    weight = jax.random.uniform(kw, (Cout, Cin, KH, KW), jnp.float32,
                                minval=-1.0, maxval=1.0) / jnp.sqrt(fan_in)
    bias = jax.random.uniform(kb, (Cout,), jnp.float32, minval=-0.1, maxval=0.1)
    gamma = 1.0 + 0.1 * jax.random.normal(kg, (Cout,), jnp.float32)
    beta = 0.1 * jax.random.normal(kbt, (Cout,), jnp.float32)

    out = basic_conv2d(x, weight, bias, gamma, beta, pad)
    out = jax.block_until_ready(out)

    ref = reference(x, weight, bias, gamma, beta, pad)
    assert out.shape == (N, Cout, H, W)
    assert jnp.allclose(out, ref, atol=1e-4, rtol=1e-4), \
        f"max abs err = {jnp.max(jnp.abs(out - ref))}"

    print("KERNEL_OK")
</pallas_src>

<mosaic_0001>
module attributes {stable_mosaic.version = 11 : i64} {
  func.func @basic_conv2d_kernel(%arg0: i32, %arg1: memref<2x4x290xf32, #tpu.memory_space<vmem>>, %arg2: memref<9x8x4xf32, #tpu.memory_space<vmem>>, %arg3: memref<8x1xf32, #tpu.memory_space<vmem>>, %arg4: memref<8x1xf32, #tpu.memory_space<vmem>>, %arg5: memref<2x8x256xf32, #tpu.memory_space<vmem>>) attributes {dimension_semantics = [#tpu.dimension_semantics<arbitrary>], iteration_bounds = array<i64: 1>, scalar_prefetch = 0 : i64, scratch_operands = 0 : i64, tpu.core_type = #tpu.core_type<tc>, window_params = [{pipeline_mode = #tpu.pipeline_mode<synchronous>, transform_indices = @transform_0, window_bounds = array<i64: 2, 4, 290>}, {pipeline_mode = #tpu.pipeline_mode<synchronous>, transform_indices = @transform_1, window_bounds = array<i64: 9, 8, 4>}, {pipeline_mode = #tpu.pipeline_mode<synchronous>, transform_indices = @transform_2, window_bounds = array<i64: 8, 1>}, {pipeline_mode = #tpu.pipeline_mode<synchronous>, transform_indices = @transform_3, window_bounds = array<i64: 8, 1>}, {pipeline_mode = #tpu.pipeline_mode<synchronous>, transform_indices = @transform_4, window_bounds = array<i64: 2, 8, 256>}]} {
    %c0 = arith.constant 0 : index
    %c0_0 = arith.constant 0 : index
    %c0_1 = arith.constant 0 : index
    %0 = vector.load %arg2[%c0, %c0_0, %c0_1] : memref<9x8x4xf32, #tpu.memory_space<vmem>>, vector<9x8x4xf32>
    %1 = tpu.iota {dimensions = array<i32: 1>} : vector<4x256xi32>
    %c16_i32 = arith.constant 16 : i32
    %c0_i32 = arith.constant 0 : i32
    %2 = arith.cmpi eq, %c16_i32, %c0_i32 : i32
    %c1_i32 = arith.constant 1 : i32
    %3 = arith.select %2, %c1_i32, %c16_i32 : i32
    %4 = vector.broadcast %3 : i32 to vector<4x256xi32>
    %5 = arith.remsi %1, %4 : vector<4x256xi32>
    %c0_i32_2 = arith.constant 0 : i32
    %6 = vector.broadcast %c0_i32_2 : i32 to vector<4x256xi32>
    %7 = arith.cmpi ne, %5, %6 : vector<4x256xi32>
    %c0_i32_3 = arith.constant 0 : i32
    %8 = vector.broadcast %c0_i32_3 : i32 to vector<4x256xi32>
    %9 = arith.cmpi slt, %5, %8 : vector<4x256xi32>
    %c0_i32_4 = arith.constant 0 : i32
    %10 = arith.cmpi slt, %3, %c0_i32_4 : i32
    %11 = vector.broadcast %10 : i1 to vector<4x256xi1>
    %12 = vector.broadcast %11 : vector<4x256xi1> to vector<4x256xi1>
    %13 = arith.xori %9, %12 : vector<4x256xi1>
    %14 = arith.andi %13, %7 : vector<4x256xi1>
    %15 = vector.broadcast %3 : i32 to vector<4x256xi32>
    %16 = arith.addi %5, %15 : vector<4x256xi32>
    %17 = arith.select %14, %16, %5 : vector<4x256xi1>, vector<4x256xi32>
    %c0_5 = arith.constant 0 : index
    %c0_6 = arith.constant 0 : index
    %c0_7 = arith.constant 0 : index
    %18 = vector.load %arg1[%c0_5, %c0_6, %c0_7] : memref<2x4x290xf32, #tpu.memory_space<vmem>>, vector<1x4x290xf32>
    %19 = vector.shape_cast %18 : vector<1x4x290xf32> to vector<4x290xf32>
    %cst = arith.constant 0.000000e+00 : f32
    %20 = vector.broadcast %cst : f32 to vector<8x256xf32>
    %21 = vector.extract_strided_slice %19 {offsets = [0, 0], sizes = [4, 256], strides = [1, 1]} : vector<4x290xf32> to vector<4x256xf32>
    %c-1_i32 = arith.constant -1 : i32
    %22 = vector.broadcast %c-1_i32 : i32 to vector<4x256xi32>
    %23 = arith.addi %17, %22 : vector<4x256xi32>
    %c0_i32_8 = arith.constant 0 : i32
    %24 = vector.broadcast %c0_i32_8 : i32 to vector<4x256xi32>
    %25 = arith.cmpi sge, %23, %24 : vector<4x256xi32>
    %c-1_i32_9 = arith.constant -1 : i32
    %26 = vector.broadcast %c-1_i32_9 : i32 to vector<4x256xi32>
    %27 = arith.addi %17, %26 : vector<4x256xi32>
    %c16_i32_10 = arith.constant 16 : i32
    %28 = vector.broadcast %c16_i32_10 : i32 to vector<4x256xi32>
    %29 = arith.cmpi slt, %27, %28 : vector<4x256xi32>
    %30 = arith.andi %25, %29 : vector<4x256xi1>
    %cst_11 = arith.constant 0.000000e+00 : f32
    %31 = vector.broadcast %cst_11 : f32 to vector<4x256xf32>
    %32 = arith.select %30, %21, %31 : vector<4x256xi1>, vector<4x256xf32>
    %33 = vector.extract_strided_slice %0 {offsets = [0, 0, 0], sizes = [1, 8, 4], strides = [1, 1, 1]} : vector<9x8x4xf32> to vector<1x8x4xf32>
    %34 = vector.shape_cast %33 : vector<1x8x4xf32> to vector<8x4xf32>
    %cst_12 = arith.constant dense<0.000000e+00> : vector<8x256xf32>
    %35 = tpu.matmul %34, %32, %cst_12 {dimension_numbers = #tpu.dot_dimension_numbers<[1], [0], [0], [1], [0, 0, 1, 1], [], []>} : vector<8x4xf32>, vector<4x256xf32>, vector<8x256xf32> -> vector<8x256xf32>
    %36 = arith.addf %20, %35 : vector<8x256xf32>
    %37 = vector.extract_strided_slice %19 {offsets = [0, 1], sizes = [4, 256], strides = [1, 1]} : vector<4x290xf32> to vector<4x256xf32>
    %38 = vector.extract_strided_slice %0 {offsets = [1, 0, 0], sizes = [1, 8, 4], strides = [1, 1, 1]} : vector<9x8x4xf32> to vector<1x8x4xf32>
    %39 = vector.shape_cast %38 : vector<1x8x4xf32> to vector<8x4xf32>
    %cst_13 = arith.constant dense<0.000000e+00> : vector<8x256xf32>
    %40 = tpu.matmul %39, %37, %cst_13 {dimension_numbers = #tpu.dot_dimension_numbers<[1], [0], [0], [1], [0, 0, 1, 1], [], []>} : vector<8x4xf32>, vector<4x256xf32>, vector<8x256xf32> -> vector<8x256xf32>
    %41 = arith.addf %36, %40 : vector<8x256xf32>
    %42 = vector.extract_strided_slice %19 {offsets = [0, 2], sizes = [4, 256], strides = [1, 1]} : vector<4x290xf32> to vector<4x256xf32>
    %c1_i32_14 = arith.constant 1 : i32
    %43 = vector.broadcast %c1_i32_14 : i32 to vector<4x256xi32>
    %44 = arith.addi %17, %43 : vector<4x256xi32>
    %c0_i32_15 = arith.constant 0 : i32
    %45 = vector.broadcast %c0_i32_15 : i32 to vector<4x256xi32>
    %46 = arith.cmpi sge, %44, %45 : vector<4x256xi32>
    %c1_i32_16 = arith.constant 1 : i32
    %47 = vector.broadcast %c1_i32_16 : i32 to vector<4x256xi32>
    %48 = arith.addi %17, %47 : vector<4x256xi32>
    %c16_i32_17 = arith.constant 16 : i32
    %49 = vector.broadcast %c16_i32_17 : i32 to vector<4x256xi32>
    %50 = arith.cmpi slt, %48, %49 : vector<4x256xi32>
    %51 = arith.andi %46, %50 : vector<4x256xi1>
    %cst_18 = arith.constant 0.000000e+00 : f32
    %52 = vector.broadcast %cst_18 : f32 to vector<4x256xf32>
    %53 = arith.select %51, %42, %52 : vector<4x256xi1>, vector<4x256xf32>
    %54 = vector.extract_strided_slice %0 {offsets = [2, 0, 0], sizes = [1, 8, 4], strides = [1, 1, 1]} : vector<9x8x4xf32> to vector<1x8x4xf32>
    %55 = vector.shape_cast %54 : vector<1x8x4xf32> to vector<8x4xf32>
    %cst_19 = arith.constant dense<0.000000e+00> : vector<8x256xf32>
    %56 = tpu.matmul %55, %53, %cst_19 {dimension_numbers = #tpu.dot_dimension_numbers<[1], [0], [0], [1], [0, 0, 1, 1], [], []>} : vector<8x4xf32>, vector<4x256xf32>, vector<8x256xf32> -> vector<8x256xf32>
    %57 = arith.addf %41, %56 : vector<8x256xf32>
    %58 = vector.extract_strided_slice %19 {offsets = [0, 16], sizes = [4, 256], strides = [1, 1]} : vector<4x290xf32> to vector<4x256xf32>
    %c-1_i32_20 = arith.constant -1 : i32
    %59 = vector.broadcast %c-1_i32_20 : i32 to vector<4x256xi32>
    %60 = arith.addi %17, %59 : vector<4x256xi32>
    %c0_i32_21 = arith.constant 0 : i32
    %61 = vector.broadcast %c0_i32_21 : i32 to vector<4x256xi32>
    %62 = arith.cmpi sge, %60, %61 : vector<4x256xi32>
    %c-1_i32_22 = arith.constant -1 : i32
    %63 = vector.broadcast %c-1_i32_22 : i32 to vector<4x256xi32>
    %64 = arith.addi %17, %63 : vector<4x256xi32>
    %c16_i32_23 = arith.constant 16 : i32
    %65 = vector.broadcast %c16_i32_23 : i32 to vector<4x256xi32>
    %66 = arith.cmpi slt, %64, %65 : vector<4x256xi32>
    %67 = arith.andi %62, %66 : vector<4x256xi1>
    %cst_24 = arith.constant 0.000000e+00 : f32
    %68 = vector.broadcast %cst_24 : f32 to vector<4x256xf32>
    %69 = arith.select %67, %58, %68 : vector<4x256xi1>, vector<4x256xf32>
    %70 = vector.extract_strided_slice %0 {offsets = [3, 0, 0], sizes = [1, 8, 4], strides = [1, 1, 1]} : vector<9x8x4xf32> to vector<1x8x4xf32>
    %71 = vector.shape_cast %70 : vector<1x8x4xf32> to vector<8x4xf32>
    %cst_25 = arith.constant dense<0.000000e+00> : vector<8x256xf32>
    %72 = tpu.matmul %71, %69, %cst_25 {dimension_numbers = #tpu.dot_dimension_numbers<[1], [0], [0], [1], [0, 0, 1, 1], [], []>} : vector<8x4xf32>, vector<4x256xf32>, vector<8x256xf32> -> vector<8x256xf32>
    %73 = arith.addf %57, %72 : vector<8x256xf32>
    %74 = vector.extract_strided_slice %19 {offsets = [0, 17], sizes = [4, 256], strides = [1, 1]} : vector<4x290xf32> to vector<4x256xf32>
    %75 = vector.extract_strided_slice %0 {offsets = [4, 0, 0], sizes = [1, 8, 4], strides = [1, 1, 1]} : vector<9x8x4xf32> to vector<1x8x4xf32>
    %76 = vector.shape_cast %75 : vector<1x8x4xf32> to vector<8x4xf32>
    %cst_26 = arith.constant dense<0.000000e+00> : vector<8x256xf32>
    %77 = tpu.matmul %76, %74, %cst_26 {dimension_numbers = #tpu.dot_dimension_numbers<[1], [0], [0], [1], [0, 0, 1, 1], [], []>} : vector<8x4xf32>, vector<4x256xf32>, vector<8x256xf32> -> vector<8x256xf32>
    %78 = arith.addf %73, %77 : vector<8x256xf32>
    %79 = vector.extract_strided_slice %19 {offsets = [0, 18], sizes = [4, 256], strides = [1, 1]} : vector<4x290xf32> to vector<4x256xf32>
    %c1_i32_27 = arith.constant 1 : i32
    %80 = vector.broadcast %c1_i32_27 : i32 to vector<4x256xi32>
    %81 = arith.addi %17, %80 : vector<4x256xi32>
    %c0_i32_28 = arith.constant 0 : i32
    %82 = vector.broadcast %c0_i32_28 : i32 to vector<4x256xi32>
    %83 = arith.cmpi sge, %81, %82 : vector<4x256xi32>
    %c1_i32_29 = arith.constant 1 : i32
    %84 = vector.broadcast %c1_i32_29 : i32 to vector<4x256xi32>
    %85 = arith.addi %17, %84 : vector<4x256xi32>
    %c16_i32_30 = arith.constant 16 : i32
    %86 = vector.broadcast %c16_i32_30 : i32 to vector<4x256xi32>
    %87 = arith.cmpi slt, %85, %86 : vector<4x256xi32>
    %88 = arith.andi %83, %87 : vector<4x256xi1>
    %cst_31 = arith.constant 0.000000e+00 : f32
    %89 = vector.broadcast %cst_31 : f32 to vector<4x256xf32>
    %90 = arith.select %88, %79, %89 : vector<4x256xi1>, vector<4x256xf32>
    %91 = vector.extract_strided_slice %0 {offsets = [5, 0, 0], sizes = [1, 8, 4], strides = [1, 1, 1]} : vector<9x8x4xf32> to vector<1x8x4xf32>
    %92 = vector.shape_cast %91 : vector<1x8x4xf32> to vector<8x4xf32>
    %cst_32 = arith.constant dense<0.000000e+00> : vector<8x256xf32>
    %93 = tpu.matmul %92, %90, %cst_32 {dimension_numbers = #tpu.dot_dimension_numbers<[1], [0], [0], [1], [0, 0, 1, 1], [], []>} : vector<8x4xf32>, vector<4x256xf32>, vector<8x256xf32> -> vector<8x256xf32>
    %94 = arith.addf %78, %93 : vector<8x256xf32>
    %95 = vector.extract_strided_slice %19 {offsets = [0, 32], sizes = [4, 256], strides = [1, 1]} : vector<4x290xf32> to vector<4x256xf32>
    %c-1_i32_33 = arith.constant -1 : i32
    %96 = vector.broadcast %c-1_i32_33 : i32 to vector<4x256xi32>
    %97 = arith.addi %17, %96 : vector<4x256xi32>
    %c0_i32_34 = arith.constant 0 : i32
    %98 = vector.broadcast %c0_i32_34 : i32 to vector<4x256xi32>
    %99 = arith.cmpi sge, %97, %98 : vector<4x256xi32>
    %c-1_i32_35 = arith.constant -1 : i32
    %100 = vector.broadcast %c-1_i32_35 : i32 to vector<4x256xi32>
    %101 = arith.addi %17, %100 : vector<4x256xi32>
    %c16_i32_36 = arith.constant 16 : i32
    %102 = vector.broadcast %c16_i32_36 : i32 to vector<4x256xi32>
    %103 = arith.cmpi slt, %101, %102 : vector<4x256xi32>
    %104 = arith.andi %99, %103 : vector<4x256xi1>
    %cst_37 = arith.constant 0.000000e+00 : f32
    %105 = vector.broadcast %cst_37 : f32 to vector<4x256xf32>
    %106 = arith.select %104, %95, %105 : vector<4x256xi1>, vector<4x256xf32>
    %107 = vector.extract_strided_slice %0 {offsets = [6, 0, 0], sizes = [1, 8, 4], strides = [1, 1, 1]} : vector<9x8x4xf32> to vector<1x8x4xf32>
    %108 = vector.shape_cast %107 : vector<1x8x4xf32> to vector<8x4xf32>
    %cst_38 = arith.constant dense<0.000000e+00> : vector<8x256xf32>
    %109 = tpu.matmul %108, %106, %cst_38 {dimension_numbers = #tpu.dot_dimension_numbers<[1], [0], [0], [1], [0, 0, 1, 1], [], []>} : vector<8x4xf32>, vector<4x256xf32>, vector<8x256xf32> -> vector<8x256xf32>
    %110 = arith.addf %94, %109 : vector<8x256xf32>
    %111 = vector.extract_strided_slice %19 {offsets = [0, 33], sizes = [4, 256], strides = [1, 1]} : vector<4x290xf32> to vector<4x256xf32>
    %112 = vector.extract_strided_slice %0 {offsets = [7, 0, 0], sizes = [1, 8, 4], strides = [1, 1, 1]} : vector<9x8x4xf32> to vector<1x8x4xf32>
    %113 = vector.shape_cast %112 : vector<1x8x4xf32> to vector<8x4xf32>
    %cst_39 = arith.constant dense<0.000000e+00> : vector<8x256xf32>
    %114 = tpu.matmul %113, %111, %cst_39 {dimension_numbers = #tpu.dot_dimension_numbers<[1], [0], [0], [1], [0, 0, 1, 1], [], []>} : vector<8x4xf32>, vector<4x256xf32>, vector<8x256xf32> -> vector<8x256xf32>
    %115 = arith.addf %110, %114 : vector<8x256xf32>
    %116 = vector.extract_strided_slice %19 {offsets = [0, 34], sizes = [4, 256], strides = [1, 1]} : vector<4x290xf32> to vector<4x256xf32>
    %c1_i32_40 = arith.constant 1 : i32
    %117 = vector.broadcast %c1_i32_40 : i32 to vector<4x256xi32>
    %118 = arith.addi %17, %117 : vector<4x256xi32>
    %c0_i32_41 = arith.constant 0 : i32
    %119 = vector.broadcast %c0_i32_41 : i32 to vector<4x256xi32>
    %120 = arith.cmpi sge, %118, %119 : vector<4x256xi32>
    %c1_i32_42 = arith.constant 1 : i32
    %121 = vector.broadcast %c1_i32_42 : i32 to vector<4x256xi32>
    %122 = arith.addi %17, %121 : vector<4x256xi32>
    %c16_i32_43 = arith.constant 16 : i32
    %123 = vector.broadcast %c16_i32_43 : i32 to vector<4x256xi32>
    %124 = arith.cmpi slt, %122, %123 : vector<4x256xi32>
    %125 = arith.andi %120, %124 : vector<4x256xi1>
    %cst_44 = arith.constant 0.000000e+00 : f32
    %126 = vector.broadcast %cst_44 : f32 to vector<4x256xf32>
    %127 = arith.select %125, %116, %126 : vector<4x256xi1>, vector<4x256xf32>
    %128 = vector.extract_strided_slice %0 {offsets = [8, 0, 0], sizes = [1, 8, 4], strides = [1, 1, 1]} : vector<9x8x4xf32> to vector<1x8x4xf32>
    %129 = vector.shape_cast %128 : vector<1x8x4xf32> to vector<8x4xf32>
    %cst_45 = arith.constant dense<0.000000e+00> : vector<8x256xf32>
    %130 = tpu.matmul %129, %127, %cst_45 {dimension_numbers = #tpu.dot_dimension_numbers<[1], [0], [0], [1], [0, 0, 1, 1], [], []>} : vector<8x4xf32>, vector<4x256xf32>, vector<8x256xf32> -> vector<8x256xf32>
    %131 = arith.addf %115, %130 : vector<8x256xf32>
    %c1 = arith.constant 1 : index
    %c0_46 = arith.constant 0 : index
    %c0_47 = arith.constant 0 : index
    %132 = vector.load %arg1[%c1, %c0_46, %c0_47] : memref<2x4x290xf32, #tpu.memory_space<vmem>>, vector<1x4x290xf32>
    %133 = vector.shape_cast %132 : vector<1x4x290xf32> to vector<4x290xf32>
    %cst_48 = arith.constant 0.000000e+00 : f32
    %134 = vector.broadcast %cst_48 : f32 to vector<8x256xf32>
    %135 = vector.extract_strided_slice %133 {offsets = [0, 0], sizes = [4, 256], strides = [1, 1]} : vector<4x290xf32> to vector<4x256xf32>
    %c-1_i32_49 = arith.constant -1 : i32
    %136 = vector.broadcast %c-1_i32_49 : i32 to vector<4x256xi32>
    %137 = arith.addi %17, %136 : vector<4x256xi32>
    %c0_i32_50 = arith.constant 0 : i32
    %138 = vector.broadcast %c0_i32_50 : i32 to vector<4x256xi32>
    %139 = arith.cmpi sge, %137, %138 : vector<4x256xi32>
    %c-1_i32_51 = arith.constant -1 : i32
    %140 = vector.broadcast %c-1_i32_51 : i32 to vector<4x256xi32>
    %141 = arith.addi %17, %140 : vector<4x256xi32>
    %c16_i32_52 = arith.constant 16 : i32
    %142 = vector.broadcast %c16_i32_52 : i32 to vector<4x256xi32>
    %143 = arith.cmpi slt, %141, %142 : vector<4x256xi32>
    %144 = arith.andi %139, %143 : vector<4x256xi1>
    %cst_53 = arith.constant 0.000000e+00 : f32
    %145 = vector.broadcast %cst_53 : f32 to vector<4x256xf32>
    %146 = arith.select %144, %135, %145 : vector<4x256xi1>, vector<4x256xf32>
    %147 = vector.extract_strided_slice %0 {offsets = [0, 0, 0], sizes = [1, 8, 4], strides = [1, 1, 1]} : vector<9x8x4xf32> to vector<1x8x4xf32>
    %148 = vector.shape_cast %147 : vector<1x8x4xf32> to vector<8x4xf32>
    %cst_54 = arith.constant dense<0.000000e+00> : vector<8x256xf32>
    %149 = tpu.matmul %148, %146, %cst_54 {dimension_numbers = #tpu.dot_dimension_numbers<[1], [0], [0], [1], [0, 0, 1, 1], [], []>} : vector<8x4xf32>, vector<4x256xf32>, vector<8x256xf32> -> vector<8x256xf32>
    %150 = arith.addf %134, %149 : vector<8x256xf32>
    %151 = vector.extract_strided_slice %133 {offsets = [0, 1], sizes = [4, 256], strides = [1, 1]} : vector<4x290xf32> to vector<4x256xf32>
    %152 = vector.extract_strided_slice %0 {offsets = [1, 0, 0], sizes = [1, 8, 4], strides = [1, 1, 1]} : vector<9x8x4xf32> to vector<1x8x4xf32>
    %153 = vector.shape_cast %152 : vector<1x8x4xf32> to vector<8x4xf32>
    %cst_55 = arith.constant dense<0.000000e+00> : vector<8x256xf32>
    %154 = tpu.matmul %153, %151, %cst_55 {dimension_numbers = #tpu.dot_dimension_numbers<[1], [0], [0], [1], [0, 0, 1, 1], [], []>} : vector<8x4xf32>, vector<4x256xf32>, vector<8x256xf32> -> vector<8x256xf32>
    %155 = arith.addf %150, %154 : vector<8x256xf32>
    %156 = vector.extract_strided_slice %133 {offsets = [0, 2], sizes = [4, 256], strides = [1, 1]} : vector<4x290xf32> to vector<4x256xf32>
    %c1_i32_56 = arith.constant 1 : i32
    %157 = vector.broadcast %c1_i32_56 : i32 to vector<4x256xi32>
    %158 = arith.addi %17, %157 : vector<4x256xi32>
    %c0_i32_57 = arith.constant 0 : i32
    %159 = vector.broadcast %c0_i32_57 : i32 to vector<4x256xi32>
    %160 = arith.cmpi sge, %158, %159 : vector<4x256xi32>
    %c1_i32_58 = arith.constant 1 : i32
    %161 = vector.broadcast %c1_i32_58 : i32 to vector<4x256xi32>
    %162 = arith.addi %17, %161 : vector<4x256xi32>
    %c16_i32_59 = arith.constant 16 : i32
    %163 = vector.broadcast %c16_i32_59 : i32 to vector<4x256xi32>
    %164 = arith.cmpi slt, %162, %163 : vector<4x256xi32>
    %165 = arith.andi %160, %164 : vector<4x256xi1>
    %cst_60 = arith.constant 0.000000e+00 : f32
    %166 = vector.broadcast %cst_60 : f32 to vector<4x256xf32>
    %167 = arith.select %165, %156, %166 : vector<4x256xi1>, vector<4x256xf32>
    %168 = vector.extract_strided_slice %0 {offsets = [2, 0, 0], sizes = [1, 8, 4], strides = [1, 1, 1]} : vector<9x8x4xf32> to vector<1x8x4xf32>
    %169 = vector.shape_cast %168 : vector<1x8x4xf32> to vector<8x4xf32>
    %cst_61 = arith.constant dense<0.000000e+00> : vector<8x256xf32>
    %170 = tpu.matmul %169, %167, %cst_61 {dimension_numbers = #tpu.dot_dimension_numbers<[1], [0], [0], [1], [0, 0, 1, 1], [], []>} : vector<8x4xf32>, vector<4x256xf32>, vector<8x256xf32> -> vector<8x256xf32>
    %171 = arith.addf %155, %170 : vector<8x256xf32>
    %172 = vector.extract_strided_slice %133 {offsets = [0, 16], sizes = [4, 256], strides = [1, 1]} : vector<4x290xf32> to vector<4x256xf32>
    %c-1_i32_62 = arith.constant -1 : i32
    %173 = vector.broadcast %c-1_i32_62 : i32 to vector<4x256xi32>
    %174 = arith.addi %17, %173 : vector<4x256xi32>
    %c0_i32_63 = arith.constant 0 : i32
    %175 = vector.broadcast %c0_i32_63 : i32 to vector<4x256xi32>
    %176 = arith.cmpi sge, %174, %175 : vector<4x256xi32>
    %c-1_i32_64 = arith.constant -1 : i32
    %177 = vector.broadcast %c-1_i32_64 : i32 to vector<4x256xi32>
    %178 = arith.addi %17, %177 : vector<4x256xi32>
    %c16_i32_65 = arith.constant 16 : i32
    %179 = vector.broadcast %c16_i32_65 : i32 to vector<4x256xi32>
    %180 = arith.cmpi slt, %178, %179 : vector<4x256xi32>
    %181 = arith.andi %176, %180 : vector<4x256xi1>
    %cst_66 = arith.constant 0.000000e+00 : f32
    %182 = vector.broadcast %cst_66 : f32 to vector<4x256xf32>
    %183 = arith.select %181, %172, %182 : vector<4x256xi1>, vector<4x256xf32>
    %184 = vector.extract_strided_slice %0 {offsets = [3, 0, 0], sizes = [1, 8, 4], strides = [1, 1, 1]} : vector<9x8x4xf32> to vector<1x8x4xf32>
    %185 = vector.shape_cast %184 : vector<1x8x4xf32> to vector<8x4xf32>
    %cst_67 = arith.constant dense<0.000000e+00> : vector<8x256xf32>
    %186 = tpu.matmul %185, %183, %cst_67 {dimension_numbers = #tpu.dot_dimension_numbers<[1], [0], [0], [1], [0, 0, 1, 1], [], []>} : vector<8x4xf32>, vector<4x256xf32>, vector<8x256xf32> -> vector<8x256xf32>
    %187 = arith.addf %171, %186 : vector<8x256xf32>
    %188 = vector.extract_strided_slice %133 {offsets = [0, 17], sizes = [4, 256], strides = [1, 1]} : vector<4x290xf32> to vector<4x256xf32>
    %189 = vector.extract_strided_slice %0 {offsets = [4, 0, 0], sizes = [1, 8, 4], strides = [1, 1, 1]} : vector<9x8x4xf32> to vector<1x8x4xf32>
    %190 = vector.shape_cast %189 : vector<1x8x4xf32> to vector<8x4xf32>
    %cst_68 = arith.constant dense<0.000000e+00> : vector<8x256xf32>
    %191 = tpu.matmul %190, %188, %cst_68 {dimension_numbers = #tpu.dot_dimension_numbers<[1], [0], [0], [1], [0, 0, 1, 1], [], []>} : vector<8x4xf32>, vector<4x256xf32>, vector<8x256xf32> -> vector<8x256xf32>
    %192 = arith.addf %187, %191 : vector<8x256xf32>
    %193 = vector.extract_strided_slice %133 {offsets = [0, 18], sizes = [4, 256], strides = [1, 1]} : vector<4x290xf32> to vector<4x256xf32>
    %c1_i32_69 = arith.constant 1 : i32
    %194 = vector.broadcast %c1_i32_69 : i32 to vector<4x256xi32>
    %195 = arith.addi %17, %194 : vector<4x256xi32>
    %c0_i32_70 = arith.constant 0 : i32
    %196 = vector.broadcast %c0_i32_70 : i32 to vector<4x256xi32>
    %197 = arith.cmpi sge, %195, %196 : vector<4x256xi32>
    %c1_i32_71 = arith.constant 1 : i32
    %198 = vector.broadcast %c1_i32_71 : i32 to vector<4x256xi32>
    %199 = arith.addi %17, %198 : vector<4x256xi32>
    %c16_i32_72 = arith.constant 16 : i32
    %200 = vector.broadcast %c16_i32_72 : i32 to vector<4x256xi32>
    %201 = arith.cmpi slt, %199, %200 : vector<4x256xi32>
    %202 = arith.andi %197, %201 : vector<4x256xi1>
    %cst_73 = arith.constant 0.000000e+00 : f32
    %203 = vector.broadcast %cst_73 : f32 to vector<4x256xf32>
    %204 = arith.select %202, %193, %203 : vector<4x256xi1>, vector<4x256xf32>
    %205 = vector.extract_strided_slice %0 {offsets = [5, 0, 0], sizes = [1, 8, 4], strides = [1, 1, 1]} : vector<9x8x4xf32> to vector<1x8x4xf32>
    %206 = vector.shape_cast %205 : vector<1x8x4xf32> to vector<8x4xf32>
    %cst_74 = arith.constant dense<0.000000e+00> : vector<8x256xf32>
    %207 = tpu.matmul %206, %204, %cst_74 {dimension_numbers = #tpu.dot_dimension_numbers<[1], [0], [0], [1], [0, 0, 1, 1], [], []>} : vector<8x4xf32>, vector<4x256xf32>, vector<8x256xf32> -> vector<8x256xf32>
    %208 = arith.addf %192, %207 : vector<8x256xf32>
    %209 = vector.extract_strided_slice %133 {offsets = [0, 32], sizes = [4, 256], strides = [1, 1]} : vector<4x290xf32> to vector<4x256xf32>
    %c-1_i32_75 = arith.constant -1 : i32
    %210 = vector.broadcast %c-1_i32_75 : i32 to vector<4x256xi32>
    %211 = arith.addi %17, %210 : vector<4x256xi32>
    %c0_i32_76 = arith.constant 0 : i32
    %212 = vector.broadcast %c0_i32_76 : i32 to vector<4x256xi32>
    %213 = arith.cmpi sge, %211, %212 : vector<4x256xi32>
    %c-1_i32_77 = arith.constant -1 : i32
    %214 = vector.broadcast %c-1_i32_77 : i32 to vector<4x256xi32>
    %215 = arith.addi %17, %214 : vector<4x256xi32>
    %c16_i32_78 = arith.constant 16 : i32
    %216 = vector.broadcast %c16_i32_78 : i32 to vector<4x256xi32>
    %217 = arith.cmpi slt, %215, %216 : vector<4x256xi32>
    %218 = arith.andi %213, %217 : vector<4x256xi1>
    %cst_79 = arith.constant 0.000000e+00 : f32
    %219 = vector.broadcast %cst_79 : f32 to vector<4x256xf32>
    %220 = arith.select %218, %209, %219 : vector<4x256xi1>, vector<4x256xf32>
    %221 = vector.extract_strided_slice %0 {offsets = [6, 0, 0], sizes = [1, 8, 4], strides = [1, 1, 1]} : vector<9x8x4xf32> to vector<1x8x4xf32>
    %222 = vector.shape_cast %221 : vector<1x8x4xf32> to vector<8x4xf32>
    %cst_80 = arith.constant dense<0.000000e+00> : vector<8x256xf32>
    %223 = tpu.matmul %222, %220, %cst_80 {dimension_numbers = #tpu.dot_dimension_numbers<[1], [0], [0], [1], [0, 0, 1, 1], [], []>} : vector<8x4xf32>, vector<4x256xf32>, vector<8x256xf32> -> vector<8x256xf32>
    %224 = arith.addf %208, %223 : vector<8x256xf32>
    %225 = vector.extract_strided_slice %133 {offsets = [0, 33], sizes = [4, 256], strides = [1, 1]} : vector<4x290xf32> to vector<4x256xf32>
    %226 = vector.extract_strided_slice %0 {offsets = [7, 0, 0], sizes = [1, 8, 4], strides = [1, 1, 1]} : vector<9x8x4xf32> to vector<1x8x4xf32>
    %227 = vector.shape_cast %226 : vector<1x8x4xf32> to vector<8x4xf32>
    %cst_81 = arith.constant dense<0.000000e+00> : vector<8x256xf32>
    %228 = tpu.matmul %227, %225, %cst_81 {dimension_numbers = #tpu.dot_dimension_numbers<[1], [0], [0], [1], [0, 0, 1, 1], [], []>} : vector<8x4xf32>, vector<4x256xf32>, vector<8x256xf32> -> vector<8x256xf32>
    %229 = arith.addf %224, %228 : vector<8x256xf32>
    %230 = vector.extract_strided_slice %133 {offsets = [0, 34], sizes = [4, 256], strides = [1, 1]} : vector<4x290xf32> to vector<4x256xf32>
    %c1_i32_82 = arith.constant 1 : i32
    %231 = vector.broadcast %c1_i32_82 : i32 to vector<4x256xi32>
    %232 = arith.addi %17, %231 : vector<4x256xi32>
    %c0_i32_83 = arith.constant 0 : i32
    %233 = vector.broadcast %c0_i32_83 : i32 to vector<4x256xi32>
    %234 = arith.cmpi sge, %232, %233 : vector<4x256xi32>
    %c1_i32_84 = arith.constant 1 : i32
    %235 = vector.broadcast %c1_i32_84 : i32 to vector<4x256xi32>
    %236 = arith.addi %17, %235 : vector<4x256xi32>
    %c16_i32_85 = arith.constant 16 : i32
    %237 = vector.broadcast %c16_i32_85 : i32 to vector<4x256xi32>
    %238 = arith.cmpi slt, %236, %237 : vector<4x256xi32>
    %239 = arith.andi %234, %238 : vector<4x256xi1>
    %cst_86 = arith.constant 0.000000e+00 : f32
    %240 = vector.broadcast %cst_86 : f32 to vector<4x256xf32>
    %241 = arith.select %239, %230, %240 : vector<4x256xi1>, vector<4x256xf32>
    %242 = vector.extract_strided_slice %0 {offsets = [8, 0, 0], sizes = [1, 8, 4], strides = [1, 1, 1]} : vector<9x8x4xf32> to vector<1x8x4xf32>
    %243 = vector.shape_cast %242 : vector<1x8x4xf32> to vector<8x4xf32>
    %cst_87 = arith.constant dense<0.000000e+00> : vector<8x256xf32>
    %244 = tpu.matmul %243, %241, %cst_87 {dimension_numbers = #tpu.dot_dimension_numbers<[1], [0], [0], [1], [0, 0, 1, 1], [], []>} : vector<8x4xf32>, vector<4x256xf32>, vector<8x256xf32> -> vector<8x256xf32>
    %245 = arith.addf %229, %244 : vector<8x256xf32>
    %cst_88 = arith.constant dense<0.000000e+00> : vector<8xf32>
    %246 = vector.multi_reduction <add>, %131, %cst_88 [1] : vector<8x256xf32> to vector<8xf32>
    %247 = vector.shape_cast %246 : vector<8xf32> to vector<8x1xf32>
    %cst_89 = arith.constant 0.000000e+00 : f32
    %248 = vector.broadcast %cst_89 : f32 to vector<8x1xf32>
    %249 = arith.addf %248, %247 : vector<8x1xf32>
    %cst_90 = arith.constant dense<0.000000e+00> : vector<8xf32>
    %250 = vector.multi_reduction <add>, %245, %cst_90 [1] : vector<8x256xf32> to vector<8xf32>
    %251 = vector.shape_cast %250 : vector<8xf32> to vector<8x1xf32>
    %252 = arith.addf %249, %251 : vector<8x1xf32>
    %cst_91 = arith.constant 5.120000e+02 : f32
    %253 = vector.broadcast %cst_91 : f32 to vector<8x1xf32>
    %254 = arith.divf %252, %253 : vector<8x1xf32>
    %255 = vector.broadcast %254 : vector<8x1xf32> to vector<8x256xf32>
    %256 = arith.subf %131, %255 : vector<8x256xf32>
    %257 = arith.mulf %256, %256 : vector<8x256xf32>
    %cst_92 = arith.constant dense<0.000000e+00> : vector<8xf32>
    %258 = vector.multi_reduction <add>, %257, %cst_92 [1] : vector<8x256xf32> to vector<8xf32>
    %259 = vector.shape_cast %258 : vector<8xf32> to vector<8x1xf32>
    %cst_93 = arith.constant 0.000000e+00 : f32
    %260 = vector.broadcast %cst_93 : f32 to vector<8x1xf32>
    %261 = arith.addf %260, %259 : vector<8x1xf32>
    %262 = vector.broadcast %254 : vector<8x1xf32> to vector<8x256xf32>
    %263 = arith.subf %245, %262 : vector<8x256xf32>
    %264 = arith.mulf %263, %263 : vector<8x256xf32>
    %cst_94 = arith.constant dense<0.000000e+00> : vector<8xf32>
    %265 = vector.multi_reduction <add>, %264, %cst_94 [1] : vector<8x256xf32> to vector<8xf32>
    %266 = vector.shape_cast %265 : vector<8xf32> to vector<8x1xf32>
    %267 = arith.addf %261, %266 : vector<8x1xf32>
    %cst_95 = arith.constant 5.120000e+02 : f32
    %268 = vector.broadcast %cst_95 : f32 to vector<8x1xf32>
    %269 = arith.divf %267, %268 : vector<8x1xf32>
    %cst_96 = arith.constant 9.99999974E-6 : f32
    %270 = vector.broadcast %cst_96 : f32 to vector<8x1xf32>
    %271 = arith.addf %269, %270 : vector<8x1xf32>
    %272 = math.rsqrt %271 : vector<8x1xf32>
    %c0_97 = arith.constant 0 : index
    %c0_98 = arith.constant 0 : index
    %273 = vector.load %arg3[%c0_97, %c0_98] : memref<8x1xf32, #tpu.memory_space<vmem>>, vector<8x1xf32>
    %274 = arith.mulf %273, %272 : vector<8x1xf32>
    %c0_99 = arith.constant 0 : index
    %c0_100 = arith.constant 0 : index
    %275 = vector.load %arg4[%c0_99, %c0_100] : memref<8x1xf32, #tpu.memory_space<vmem>>, vector<8x1xf32>
    %276 = arith.mulf %254, %274 : vector<8x1xf32>
    %277 = arith.subf %275, %276 : vector<8x1xf32>
    %278 = vector.broadcast %274 : vector<8x1xf32> to vector<8x256xf32>
    %279 = arith.mulf %131, %278 : vector<8x256xf32>
    %280 = vector.broadcast %277 : vector<8x1xf32> to vector<8x256xf32>
    %281 = arith.addf %279, %280 : vector<8x256xf32>
    %cst_101 = arith.constant 0.000000e+00 : f32
    %282 = vector.broadcast %cst_101 : f32 to vector<8x256xf32>
    %283 = arith.cmpf oge, %281, %282 : vector<8x256xf32>
    %cst_102 = arith.constant 0.00999999977 : f32
    %284 = vector.broadcast %cst_102 : f32 to vector<8x256xf32>
    %285 = arith.mulf %284, %281 : vector<8x256xf32>
    %286 = arith.select %283, %281, %285 : vector<8x256xi1>, vector<8x256xf32>
    %c0_103 = arith.constant 0 : index
    %c0_104 = arith.constant 0 : index
    %c0_105 = arith.constant 0 : index
    %287 = vector.load %arg5[%c0_103, %c0_104, %c0_105] : memref<2x8x256xf32, #tpu.memory_space<vmem>>, vector<1x8x256xf32>
    %288 = vector.shape_cast %287 : vector<1x8x256xf32> to vector<8x256xf32>
    %289 = vector.shape_cast %286 : vector<8x256xf32> to vector<1x8x256xf32>
    tpu.vector_store %arg5[%c0_103, %c0_104, %c0_105], %289 {strides = array<i32>} : memref<2x8x256xf32, #tpu.memory_space<vmem>>, vector<1x8x256xf32>,
    %290 = vector.broadcast %274 : vector<8x1xf32> to vector<8x256xf32>
    %291 = arith.mulf %245, %290 : vector<8x256xf32>
    %292 = vector.broadcast %277 : vector<8x1xf32> to vector<8x256xf32>
    %293 = arith.addf %291, %292 : vector<8x256xf32>
    %cst_106 = arith.constant 0.000000e+00 : f32
    %294 = vector.broadcast %cst_106 : f32 to vector<8x256xf32>
    %295 = arith.cmpf oge, %293, %294 : vector<8x256xf32>
    %cst_107 = arith.constant 0.00999999977 : f32
    %296 = vector.broadcast %cst_107 : f32 to vector<8x256xf32>
    %297 = arith.mulf %296, %293 : vector<8x256xf32>
    %298 = arith.select %295, %293, %297 : vector<8x256xi1>, vector<8x256xf32>
    %c1_108 = arith.constant 1 : index
    %c0_109 = arith.constant 0 : index
    %c0_110 = arith.constant 0 : index
    %299 = vector.load %arg5[%c1_108, %c0_109, %c0_110] : memref<2x8x256xf32, #tpu.memory_space<vmem>>, vector<1x8x256xf32>
    %300 = vector.shape_cast %299 : vector<1x8x256xf32> to vector<8x256xf32>
    %301 = vector.shape_cast %298 : vector<8x256xf32> to vector<1x8x256xf32>
    tpu.vector_store %arg5[%c1_108, %c0_109, %c0_110], %301 {strides = array<i32>} : memref<2x8x256xf32, #tpu.memory_space<vmem>>, vector<1x8x256xf32>,
    return
  }
  func.func @transform_0(%arg0: i32) -> (i32, i32, i32) {
    %c0_i32 = arith.constant 0 : i32
    %c0_i32_0 = arith.constant 0 : i32
    %c0_i32_1 = arith.constant 0 : i32
    %c0_i32_2 = arith.constant 0 : i32
    return %c0_i32, %c0_i32_0, %c0_i32_1 : i32, i32, i32
  }
  func.func @transform_1(%arg0: i32) -> (i32, i32, i32) {
    %c0_i32 = arith.constant 0 : i32
    %c0_i32_0 = arith.constant 0 : i32
    %c0_i32_1 = arith.constant 0 : i32
    %c0_i32_2 = arith.constant 0 : i32
    return %c0_i32, %c0_i32_0, %c0_i32_1 : i32, i32, i32
  }
  func.func @transform_2(%arg0: i32) -> (i32, i32) {
    %c0_i32 = arith.constant 0 : i32
    %c0_i32_0 = arith.constant 0 : i32
    %c0_i32_1 = arith.constant 0 : i32
    return %c0_i32, %c0_i32_0 : i32, i32
  }
  func.func @transform_3(%arg0: i32) -> (i32, i32) {
    %c0_i32 = arith.constant 0 : i32
    %c0_i32_0 = arith.constant 0 : i32
    %c0_i32_1 = arith.constant 0 : i32
    return %c0_i32, %c0_i32_0 : i32, i32
  }
  func.func @transform_4(%arg0: i32) -> (i32, i32, i32) {
    %c0_i32 = arith.constant 0 : i32
    %c0_i32_0 = arith.constant 0 : i32
    %c0_i32_1 = arith.constant 0 : i32
    %c0_i32_2 = arith.constant 0 : i32
    return %c0_i32, %c0_i32_0, %c0_i32_1 : i32, i32, i32
  }
}

</mosaic_0001>

<llo_original>
// kernel: tpu_custom_call.1
$region0: #{tpu_custom_call.1}
  #allocation0 [shape = 'u32[]', space=smem, size = 0x4, offset = 0x4, fixed_abs, tag = 'smem constant byte address 0x4 - core index']
  #allocation1 [shape = 'u32[144,128]{1,0:T(1,128)}', space=vmem, size = 0x12000, scoped, tag = 'internal scratch']
  %s0 = inlined_call_operand.vmem [shape: f32[2,4,290], index: 0, kind: input, shape index: {}]
  %s1 = inlined_call_operand.vmem [shape: f32[9,8,4], index: 1, kind: input, shape index: {}]
  %s2 = inlined_call_operand.vmem [shape: f32[8,1], index: 2, kind: input, shape index: {}]
  %s3 = inlined_call_operand.vmem [shape: f32[8,1], index: 3, kind: input, shape index: {}]
  %s4 = inlined_call_operand.hbm [shape: f32[2,8,256], index: 4, kind: output, shape index: {}]
  %s5 = sld [smem:[#allocation0]]
  $region26: #{tpu_custom_call.1} parent=0
    _
  %s7 = ssub.s32 1, %s5
  %s8 = scalar_select 0, %s7, %s5
  $region1: #{tpu_custom_call.1} parent=0
    #allocation2 [shape = 'u8[16384]{0}', space=vmem, size = 0x4000, scoped, tag = 'output window, operand 0, single buffered']
    #allocation3 [shape = 's32[1]{0}', space=sflag, size = 0x4, scoped, tag = 'scoped memory for tpu_custom_call.1']
    %9 = vsyncpa [#allocation3], 0
    // Predicated region
    $region2: #{tpu_custom_call.1} parent=1 // pred_check
      _
    $region3: #{tpu_custom_call.1} parent=1 // pred_check_branch
      %11 = sbr.rel (0) target = $region5
    $region4: #{tpu_custom_call.1} parent=1 // pred_region
      _
    $region5: #{tpu_custom_call.1} parent=1 // pred_fallthru
      _
    // Predicated region
    $region6: #{tpu_custom_call.1} parent=1 // pred_check
      _
    $region7: #{tpu_custom_call.1} parent=1 // pred_check_branch
      %13 = sbr.rel (0) target = $region9
    $region8: #{tpu_custom_call.1} parent=1 // pred_region
      _
    $region9: #{tpu_custom_call.1} parent=1 // pred_fallthru
      _
    // Predicated region
    $region10: #{tpu_custom_call.1} parent=1 // pred_check
      _
    $region11: #{tpu_custom_call.1} parent=1 // pred_check_branch
      %15 = sbr.rel (0) target = $region13
    $region12: #{tpu_custom_call.1} parent=1 // pred_region
      _
    $region13: #{tpu_custom_call.1} parent=1 // pred_fallthru
      _
    // Predicated region
    $region14: #{tpu_custom_call.1} parent=1 // pred_check
      _
    $region15: #{tpu_custom_call.1} parent=1 // pred_check_branch
      %17 = sbr.rel (0) target = $region17
    $region16: #{tpu_custom_call.1} parent=1 // pred_region
      _
    $region17: #{tpu_custom_call.1} parent=1 // pred_fallthru
      _
    %v18 = vld [vmem:[%s1] sm:$0xff]
    %v19 = vld [vmem:[%s1 + $0x8] sm:$0xff]
    %v20 = vld [vmem:[%s1 + $0x10] sm:$0xff]
    %v21 = vld [vmem:[%s1 + $0x18] sm:$0xff]
    %v22 = vld [vmem:[%s1 + $0x20] sm:$0xff]
    %v23 = vld [vmem:[%s1 + $0x28] sm:$0xff]
    %v24 = vld [vmem:[%s1 + $0x30] sm:$0xff]
    %v25 = vld [vmem:[%s1 + $0x38] sm:$0xff]
    %v26 = vld [vmem:[%s1 + $0x40] sm:$0xff]
    %v27 = vlaneseq
    %v28 = vand.u32 %v27, 127
    %v29 = vadd.s32 %v28, 128
    %vm30 = vcmp.lt.s32.totalorder %v28, 0
    %v31 = vsub.s32 0, %v28
    %v32 = vsel %vm30, %v31, %v28
    %v33 = vshrl.u32 %v32, 4
    %v34 = vand.u32 %v32, 15
    %v35 = vsub.s32 0, %v34
    %v36 = vsel %vm30, %v35, %v34
    %vm37 = vcmp.lt.s32.totalorder %v29, 0
    %v38 = vsub.s32 0, %v29
    %v39 = vsel %vm37, %v38, %v29
    %v40 = vshrl.u32 %v39, 4
    %v41 = vand.u32 %v39, 15
    %v42 = vsub.s32 0, %v41
    %v43 = vsel %vm37, %v42, %v41
    %vm44 = vcmp.ne.s32.totalorder %v36, 0
    %vm45 = vcmp.ne.s32.totalorder %v43, 0
    %vm46 = vcmp.lt.s32.totalorder %v36, 0
    %vm47 = vcmp.lt.s32.totalorder %v43, 0
    %vm48 = vmand %vm46, %vm44
    %vm49 = vmand %vm47, %vm45
    %v50 = vadd.s32 %v36, 16
    %v51 = vadd.s32 %v43, 16
    %v52 = vsel %vm48, %v50, %v36
    %v53 = vsel %vm49, %v51, %v43
    %v54 = vld [vmem:[%s0] sm:$0xff]
    %v55 = vld [vmem:[%s0 + $0x8] sm:$0xf]
    %v56 = vadd.s32 %v52, 4294967295
    %v57 = vadd.s32 %v53, 4294967295
    %vm58 = vcmp.ge.s32.totalorder %v56, 0
    %vm59 = vcmp.ge.s32.totalorder %v57, 0
    %vm60 = vcmp.lt.s32.totalorder %v56, 16
    %vm61 = vcmp.lt.s32.totalorder %v57, 16
    %vm62 = vmand %vm58, %vm60
    %vm63 = vmand %vm59, %vm61
    %v65 = vcombine.high %v54, %v54
    %v67 = vsel %vm62, %v54, 0.0
    %v68 = vsel %vm63, %v65, 0.0
    %70 = vrot.lane.b32.xlu0 %v54, 127
    %v71 = vpop.permute.xlu0 %70
    %72 = vrot.lane.b32.xlu0 %v65, 127
    %v73 = vpop.permute.xlu0 %72
    %74 = vrot.lane.b32.xlu0 %v55, 127
    %v75 = vpop.permute.xlu0 %74
    %vm76 = vcmask 1039360
    %v77 = vsel %vm76, %v71, %v73
    %v78 = vsel %vm76, %v73, %v75
    %vm79 = vcmask 31744
    %v81 = vsel %vm79, %v19, 0
    %vm83 = vcmask 1043456
    %v84 = vsel %vm83, %v77, 0
    %v86 = vsel %vm83, %v78, 0
    %88 = vmatprep.subr.mxu0 0.0
    %89 = vmatpush1.msra.mxu0 0.0
    %90 = vmatprep.subr.mxu0 0.0
    %91 = vmatpush1.msra.mxu0 0.0
    %92 = vmatprep.subr.mxu0 0.0
    %93 = vmatpush1.msra.mxu0 0.0
    %94 = vmatprep.subr.mxu0 0.0
    %95 = vmatpush1.msra.mxu0 0.0
    %96 = vmatprep.subr.mxu0 0.0
    %97 = vmatpush1.msra.mxu0 0.0
    %98 = vmatprep.subr.mxu0 0.0
    %99 = vmatpush1.msra.mxu0 0.0
    %100 = vmatprep.subr.mxu0 0.0
    %101 = vmatpush1.msra.mxu0 0.0
    %102 = vmatprep.subr.mxu0 0.0
    %103 = vmatpush1.msra.mxu0 0.0
    %104 = vmatprep.subr.mxu0 0.0
    %105 = vmatpush1.msra.mxu0 0.0
    %106 = vmatprep.subr.mxu0 0.0
    %107 = vmatpush1.msra.mxu0 0.0
    %108 = vmatprep.subr.mxu0 0.0
    %109 = vmatpush1.msra.mxu0 0.0
    %110 = vmatprep.subr.mxu0 0.0
    %111 = vmatpush1.msra.mxu0 0.0
    %112 = vmatprep.subr.mxu0 0.0
    %113 = vmatpush1.msra.mxu0 0.0
    %114 = vmatprep.subr.mxu0 0.0
    %115 = vmatpush1.msra.mxu0 0.0
    %116 = vmatprep.subr.mxu0 0.0
    %117 = vmatpush1.msra.mxu0 0.0
    %118 = vmatprep.subr.mxu0 %v86
    %119 = vmatpush1.msra.mxu0 %v84
    %120 = vmatprep.subr.mxu0 0.0
    %121 = vmatpush2.msra.mxu0 0.0
    %122 = vmatprep.subr.mxu0 0.0
    %123 = vmatpush2.msra.mxu0 0.0
    %124 = vmatprep.subr.mxu0 0.0
    %125 = vmatpush2.msra.mxu0 0.0
    %126 = vmatprep.subr.mxu0 0.0
    %127 = vmatpush2.msra.mxu0 0.0
    %128 = vmatprep.subr.mxu0 0.0
    %129 = vmatpush2.msra.mxu0 0.0
    %130 = vmatprep.subr.mxu0 0.0
    %131 = vmatpush2.msra.mxu0 0.0
    %132 = vmatprep.subr.mxu0 0.0
    %133 = vmatpush2.msra.mxu0 0.0
    %134 = vmatprep.subr.mxu0 0.0
    %135 = vmatpush2.msra.mxu0 0.0
    %136 = vmatprep.subr.mxu0 0.0
    %137 = vmatpush2.msra.mxu0 0.0
    %138 = vmatprep.subr.mxu0 0.0
    %139 = vmatpush2.msra.mxu0 0.0
    %140 = vmatprep.subr.mxu0 0.0
    %141 = vmatpush2.msra.mxu0 0.0
    %142 = vmatprep.subr.mxu0 0.0
    %143 = vmatpush2.msra.mxu0 0.0
    %144 = vmatprep.subr.mxu0 0.0
    %145 = vmatpush2.msra.mxu0 0.0
    %146 = vmatprep.subr.mxu0 0.0
    %147 = vmatpush2.msra.mxu0 0.0
    %148 = vmatprep.subr.mxu0 0.0
    %149 = vmatpush2.msra.mxu0 0.0
    %150 = vmatprep.subr.mxu0 0.0
    %151 = vmatpush2.msra.mxu0 0.0
    %152 = vmatprep.mubr.f32.mxu0 0.0
    %153 = vmatmul.mubr.f32.gmra.mxu0 %v81
    %v154 = vpop.f32.mrf.mxu0
    %v155 = vadd.f32 0.0, %v154
    %v156 = vpop.f32.mrf.mxu0
    %v157 = vadd.f32 0.0, %v156
    %158 = vdwg.mxu0
    %v160 = vsel %vm79, %v18, 0
    %v163 = vsel %vm83, %v67, 0
    %v166 = vsel %vm83, %v68, 0
    %168 = vmatprep.subr.mxu0 0.0
    %169 = vmatpush1.msra.mxu0 0.0
    %170 = vmatprep.subr.mxu0 0.0
    %171 = vmatpush1.msra.mxu0 0.0
    %172 = vmatprep.subr.mxu0 0.0
    %173 = vmatpush1.msra.mxu0 0.0
    %174 = vmatprep.subr.mxu0 0.0
    %175 = vmatpush1.msra.mxu0 0.0
    %176 = vmatprep.subr.mxu0 0.0
    %177 = vmatpush1.msra.mxu0 0.0
    %178 = vmatprep.subr.mxu0 0.0
    %179 = vmatpush1.msra.mxu0 0.0
    %180 = vmatprep.subr.mxu0 0.0
    %181 = vmatpush1.msra.mxu0 0.0
    %182 = vmatprep.subr.mxu0 0.0
    %183 = vmatpush1.msra.mxu0 0.0
    %184 = vmatprep.subr.mxu0 0.0
    %185 = vmatpush1.msra.mxu0 0.0
    %186 = vmatprep.subr.mxu0 0.0
    %187 = vmatpush1.msra.mxu0 0.0
    %188 = vmatprep.subr.mxu0 0.0
    %189 = vmatpush1.msra.mxu0 0.0
    %190 = vmatprep.subr.mxu0 0.0
    %191 = vmatpush1.msra.mxu0 0.0
    %192 = vmatprep.subr.mxu0 0.0
    %193 = vmatpush1.msra.mxu0 0.0
    %194 = vmatprep.subr.mxu0 0.0
    %195 = vmatpush1.msra.mxu0 0.0
    %196 = vmatprep.subr.mxu0 0.0
    %197 = vmatpush1.msra.mxu0 0.0
    %198 = vmatprep.subr.mxu0 %v166
    %199 = vmatpush1.msra.mxu0 %v163
    %200 = vmatprep.subr.mxu0 0.0
    %201 = vmatpush2.msra.mxu0 0.0
    %202 = vmatprep.subr.mxu0 0.0
    %203 = vmatpush2.msra.mxu0 0.0
    %204 = vmatprep.subr.mxu0 0.0
    %205 = vmatpush2.msra.mxu0 0.0
    %206 = vmatprep.subr.mxu0 0.0
    %207 = vmatpush2.msra.mxu0 0.0
    %208 = vmatprep.subr.mxu0 0.0
    %209 = vmatpush2.msra.mxu0 0.0
    %210 = vmatprep.subr.mxu0 0.0
    %211 = vmatpush2.msra.mxu0 0.0
    %212 = vmatprep.subr.mxu0 0.0
    %213 = vmatpush2.msra.mxu0 0.0
    %214 = vmatprep.subr.mxu0 0.0
    %215 = vmatpush2.msra.mxu0 0.0
    %216 = vmatprep.subr.mxu0 0.0
    %217 = vmatpush2.msra.mxu0 0.0
    %218 = vmatprep.subr.mxu0 0.0
    %219 = vmatpush2.msra.mxu0 0.0
    %220 = vmatprep.subr.mxu0 0.0
    %221 = vmatpush2.msra.mxu0 0.0
    %222 = vmatprep.subr.mxu0 0.0
    %223 = vmatpush2.msra.mxu0 0.0
    %224 = vmatprep.subr.mxu0 0.0
    %225 = vmatpush2.msra.mxu0 0.0
    %226 = vmatprep.subr.mxu0 0.0
    %227 = vmatpush2.msra.mxu0 0.0
    %228 = vmatprep.subr.mxu0 0.0
    %229 = vmatpush2.msra.mxu0 0.0
    %230 = vmatprep.subr.mxu0 0.0
    %231 = vmatpush2.msra.mxu0 0.0
    %232 = vmatprep.mubr.f32.mxu0 0.0
    %233 = vmatmul.mubr.f32.gmra.mxu0 %v160
    %v234 = vpop.f32.mrf.mxu0
    %v235 = vadd.f32 %v155, %v234
    %v236 = vpop.f32.mrf.mxu0
    %v237 = vadd.f32 %v157, %v236
    %238 = vdwg.mxu0
    %v239 = vadd.s32 %v52, 1
    %v240 = vadd.s32 %v53, 1
    %vm241 = vcmp.ge.s32.totalorder %v239, 0
    %vm242 = vcmp.ge.s32.totalorder %v240, 0
    %vm243 = vcmp.lt.s32.totalorder %v239, 16
    %vm244 = vcmp.lt.s32.totalorder %v240, 16
    %vm245 = vmand %vm241, %vm243
    %vm246 = vmand %vm242, %vm244
    %247 = vrot.lane.b32.xlu0 %v54, 126
    %v248 = vpop.permute.xlu0 %247
    %249 = vrot.lane.b32.xlu0 %v65, 126
    %v250 = vpop.permute.xlu0 %249
    %251 = vrot.lane.b32.xlu0 %v55, 126
    %v252 = vpop.permute.xlu0 %251
    %vm253 = vcmask 1031168
    %v254 = vsel %vm253, %v248, %v250
    %v255 = vsel %vm253, %v250, %v252
    %v258 = vsel %vm245, %v254, 0.0
    %v259 = vsel %vm246, %v255, 0.0
    %v261 = vsel %vm79, %v20, 0
    %v264 = vsel %vm83, %v258, 0
    %v267 = vsel %vm83, %v259, 0
    %269 = vmatprep.subr.mxu0 0.0
    %270 = vmatpush1.msra.mxu0 0.0
    %271 = vmatprep.subr.mxu0 0.0
    %272 = vmatpush1.msra.mxu0 0.0
    %273 = vmatprep.subr.mxu0 0.0
    %274 = vmatpush1.msra.mxu0 0.0
    %275 = vmatprep.subr.mxu0 0.0
    %276 = vmatpush1.msra.mxu0 0.0
    %277 = vmatprep.subr.mxu0 0.0
    %278 = vmatpush1.msra.mxu0 0.0
    %279 = vmatprep.subr.mxu0 0.0
    %280 = vmatpush1.msra.mxu0 0.0
    %281 = vmatprep.subr.mxu0 0.0
    %282 = vmatpush1.msra.mxu0 0.0
    %283 = vmatprep.subr.mxu0 0.0
    %284 = vmatpush1.msra.mxu0 0.0
    %285 = vmatprep.subr.mxu0 0.0
    %286 = vmatpush1.msra.mxu0 0.0
    %287 = vmatprep.subr.mxu0 0.0
    %288 = vmatpush1.msra.mxu0 0.0
    %289 = vmatprep.subr.mxu0 0.0
    %290 = vmatpush1.msra.mxu0 0.0
    %291 = vmatprep.subr.mxu0 0.0
    %292 = vmatpush1.msra.mxu0 0.0
    %293 = vmatprep.subr.mxu0 0.0
    %294 = vmatpush1.msra.mxu0 0.0
    %295 = vmatprep.subr.mxu0 0.0
    %296 = vmatpush1.msra.mxu0 0.0
    %297 = vmatprep.subr.mxu0 0.0
    %298 = vmatpush1.msra.mxu0 0.0
    %299 = vmatprep.subr.mxu0 %v267
    %300 = vmatpush1.msra.mxu0 %v264
    %301 = vmatprep.subr.mxu0 0.0
    %302 = vmatpush2.msra.mxu0 0.0
    %303 = vmatprep.subr.mxu0 0.0
    %304 = vmatpush2.msra.mxu0 0.0
    %305 = vmatprep.subr.mxu0 0.0
    %306 = vmatpush2.msra.mxu0 0.0
    %307 = vmatprep.subr.mxu0 0.0
    %308 = vmatpush2.msra.mxu0 0.0
    %309 = vmatprep.subr.mxu0 0.0
    %310 = vmatpush2.msra.mxu0 0.0
    %311 = vmatprep.subr.mxu0 0.0
    %312 = vmatpush2.msra.mxu0 0.0
    %313 = vmatprep.subr.mxu0 0.0
    %314 = vmatpush2.msra.mxu0 0.0
    %315 = vmatprep.subr.mxu0 0.0
    %316 = vmatpush2.msra.mxu0 0.0
    %317 = vmatprep.subr.mxu0 0.0
    %318 = vmatpush2.msra.mxu0 0.0
    %319 = vmatprep.subr.mxu0 0.0
    %320 = vmatpush2.msra.mxu0 0.0
    %321 = vmatprep.subr.mxu0 0.0
    %322 = vmatpush2.msra.mxu0 0.0
    %323 = vmatprep.subr.mxu0 0.0
    %324 = vmatpush2.msra.mxu0 0.0
    %325 = vmatprep.subr.mxu0 0.0
    %326 = vmatpush2.msra.mxu0 0.0
    %327 = vmatprep.subr.mxu0 0.0
    %328 = vmatpush2.msra.mxu0 0.0
    %329 = vmatprep.subr.mxu0 0.0
    %330 = vmatpush2.msra.mxu0 0.0
    %331 = vmatprep.subr.mxu0 0.0
    %332 = vmatpush2.msra.mxu0 0.0
    %333 = vmatprep.mubr.f32.mxu0 0.0
    %334 = vmatmul.mubr.f32.gmra.mxu0 %v261
    %v335 = vpop.f32.mrf.mxu0
    %v336 = vadd.f32 0.0, %v335
    %v337 = vpop.f32.mrf.mxu0
    %v338 = vadd.f32 0.0, %v337
    %339 = vdwg.mxu0
    %v340 = vadd.f32 %v235, %v336
    %v341 = vadd.f32 %v237, %v338
    %342 = vrot.lane.b32.xlu0 %v54, 112
    %v343 = vpop.permute.xlu0 %342
    %344 = vrot.lane.b32.xlu0 %v65, 112
    %v345 = vpop.permute.xlu0 %344
    %346 = vrot.lane.b32.xlu0 %v55, 112
    %v347 = vpop.permute.xlu0 %346
    %vm348 = vcmask 916480
    %v349 = vsel %vm348, %v343, %v345
    %v350 = vsel %vm348, %v345, %v347
    %v353 = vsel %vm62, %v349, 0.0
    %v354 = vsel %vm63, %v350, 0.0
    %v356 = vsel %vm79, %v21, 0
    %v359 = vsel %vm83, %v353, 0
    %v362 = vsel %vm83, %v354, 0
    %364 = vmatprep.subr.mxu0 0.0
    %365 = vmatpush1.msra.mxu0 0.0
    %366 = vmatprep.subr.mxu0 0.0
    %367 = vmatpush1.msra.mxu0 0.0
    %368 = vmatprep.subr.mxu0 0.0
    %369 = vmatpush1.msra.mxu0 0.0
    %370 = vmatprep.subr.mxu0 0.0
    %371 = vmatpush1.msra.mxu0 0.0
    %372 = vmatprep.subr.mxu0 0.0
    %373 = vmatpush1.msra.mxu0 0.0
    %374 = vmatprep.subr.mxu0 0.0
    %375 = vmatpush1.msra.mxu0 0.0
    %376 = vmatprep.subr.mxu0 0.0
    %377 = vmatpush1.msra.mxu0 0.0
    %378 = vmatprep.subr.mxu0 0.0
    %379 = vmatpush1.msra.mxu0 0.0
    %380 = vmatprep.subr.mxu0 0.0
    %381 = vmatpush1.msra.mxu0 0.0
    %382 = vmatprep.subr.mxu0 0.0
    %383 = vmatpush1.msra.mxu0 0.0
    %384 = vmatprep.subr.mxu0 0.0
    %385 = vmatpush1.msra.mxu0 0.0
    %386 = vmatprep.subr.mxu0 0.0
    %387 = vmatpush1.msra.mxu0 0.0
    %388 = vmatprep.subr.mxu0 0.0
    %389 = vmatpush1.msra.mxu0 0.0
    %390 = vmatprep.subr.mxu0 0.0
    %391 = vmatpush1.msra.mxu0 0.0
    %392 = vmatprep.subr.mxu0 0.0
    %393 = vmatpush1.msra.mxu0 0.0
    %394 = vmatprep.subr.mxu0 %v362
    %395 = vmatpush1.msra.mxu0 %v359
    %396 = vmatprep.subr.mxu0 0.0
    %397 = vmatpush2.msra.mxu0 0.0
    %398 = vmatprep.subr.mxu0 0.0
    %399 = vmatpush2.msra.mxu0 0.0
    %400 = vmatprep.subr.mxu0 0.0
    %401 = vmatpush2.msra.mxu0 0.0
    %402 = vmatprep.subr.mxu0 0.0
    %403 = vmatpush2.msra.mxu0 0.0
    %404 = vmatprep.subr.mxu0 0.0
    %405 = vmatpush2.msra.mxu0 0.0
    %406 = vmatprep.subr.mxu0 0.0
    %407 = vmatpush2.msra.mxu0 0.0
    %408 = vmatprep.subr.mxu0 0.0
    %409 = vmatpush2.msra.mxu0 0.0
    %410 = vmatprep.subr.mxu0 0.0
    %411 = vmatpush2.msra.mxu0 0.0
    %412 = vmatprep.subr.mxu0 0.0
    %413 = vmatpush2.msra.mxu0 0.0
    %414 = vmatprep.subr.mxu0 0.0
    %415 = vmatpush2.msra.mxu0 0.0
    %416 = vmatprep.subr.mxu0 0.0
    %417 = vmatpush2.msra.mxu0 0.0
    %418 = vmatprep.subr.mxu0 0.0
    %419 = vmatpush2.msra.mxu0 0.0
    %420 = vmatprep.subr.mxu0 0.0
    %421 = vmatpush2.msra.mxu0 0.0
    %422 = vmatprep.subr.mxu0 0.0
    %423 = vmatpush2.msra.mxu0 0.0
    %424 = vmatprep.subr.mxu0 0.0
    %425 = vmatpush2.msra.mxu0 0.0
    %426 = vmatprep.subr.mxu0 0.0
    %427 = vmatpush2.msra.mxu0 0.0
    %428 = vmatprep.mubr.f32.mxu0 0.0
    %429 = vmatmul.mubr.f32.gmra.mxu0 %v356
    %v430 = vpop.f32.mrf.mxu0
    %v431 = vadd.f32 0.0, %v430
    %v432 = vpop.f32.mrf.mxu0
    %v433 = vadd.f32 0.0, %v432
    %434 = vdwg.mxu0
    %v435 = vadd.f32 %v340, %v431
    %v436 = vadd.f32 %v341, %v433
    %437 = vrot.lane.b32.xlu0 %v54, 111
    %v438 = vpop.permute.xlu0 %437
    %439 = vrot.lane.b32.xlu0 %v65, 111
    %v440 = vpop.permute.xlu0 %439
    %441 = vrot.lane.b32.xlu0 %v55, 111
    %v442 = vpop.permute.xlu0 %441
    %vm443 = vcmask 908288
    %v444 = vsel %vm443, %v438, %v440
    %v445 = vsel %vm443, %v440, %v442
    %v447 = vsel %vm79, %v22, 0
    %v449 = vsel %vm83, %v444, 0
    %v451 = vsel %vm83, %v445, 0
    %453 = vmatprep.subr.mxu0 0.0
    %454 = vmatpush1.msra.mxu0 0.0
    %455 = vmatprep.subr.mxu0 0.0
    %456 = vmatpush1.msra.mxu0 0.0
    %457 = vmatprep.subr.mxu0 0.0
    %458 = vmatpush1.msra.mxu0 0.0
    %459 = vmatprep.subr.mxu0 0.0
    %460 = vmatpush1.msra.mxu0 0.0
    %461 = vmatprep.subr.mxu0 0.0
    %462 = vmatpush1.msra.mxu0 0.0
    %463 = vmatprep.subr.mxu0 0.0
    %464 = vmatpush1.msra.mxu0 0.0
    %465 = vmatprep.subr.mxu0 0.0
    %466 = vmatpush1.msra.mxu0 0.0
    %467 = vmatprep.subr.mxu0 0.0
    %468 = vmatpush1.msra.mxu0 0.0
    %469 = vmatprep.subr.mxu0 0.0
    %470 = vmatpush1.msra.mxu0 0.0
    %471 = vmatprep.subr.mxu0 0.0
    %472 = vmatpush1.msra.mxu0 0.0
    %473 = vmatprep.subr.mxu0 0.0
    %474 = vmatpush1.msra.mxu0 0.0
    %475 = vmatprep.subr.mxu0 0.0
    %476 = vmatpush1.msra.mxu0 0.0
    %477 = vmatprep.subr.mxu0 0.0
    %478 = vmatpush1.msra.mxu0 0.0
    %479 = vmatprep.subr.mxu0 0.0
    %480 = vmatpush1.msra.mxu0 0.0
    %481 = vmatprep.subr.mxu0 0.0
    %482 = vmatpush1.msra.mxu0 0.0
    %483 = vmatprep.subr.mxu0 %v451
    %484 = vmatpush1.msra.mxu0 %v449
    %485 = vmatprep.subr.mxu0 0.0
    %486 = vmatpush2.msra.mxu0 0.0
    %487 = vmatprep.subr.mxu0 0.0
    %488 = vmatpush2.msra.mxu0 0.0
    %489 = vmatprep.subr.mxu0 0.0
    %490 = vmatpush2.msra.mxu0 0.0
    %491 = vmatprep.subr.mxu0 0.0
    %492 = vmatpush2.msra.mxu0 0.0
    %493 = vmatprep.subr.mxu0 0.0
    %494 = vmatpush2.msra.mxu0 0.0
    %495 = vmatprep.subr.mxu0 0.0
    %496 = vmatpush2.msra.mxu0 0.0
    %497 = vmatprep.subr.mxu0 0.0
    %498 = vmatpush2.msra.mxu0 0.0
    %499 = vmatprep.subr.mxu0 0.0
    %500 = vmatpush2.msra.mxu0 0.0
    %501 = vmatprep.subr.mxu0 0.0
    %502 = vmatpush2.msra.mxu0 0.0
    %503 = vmatprep.subr.mxu0 0.0
    %504 = vmatpush2.msra.mxu0 0.0
    %505 = vmatprep.subr.mxu0 0.0
    %506 = vmatpush2.msra.mxu0 0.0
    %507 = vmatprep.subr.mxu0 0.0
    %508 = vmatpush2.msra.mxu0 0.0
    %509 = vmatprep.subr.mxu0 0.0
    %510 = vmatpush2.msra.mxu0 0.0
    %511 = vmatprep.subr.mxu0 0.0
    %512 = vmatpush2.msra.mxu0 0.0
    %513 = vmatprep.subr.mxu0 0.0
    %514 = vmatpush2.msra.mxu0 0.0
    %515 = vmatprep.subr.mxu0 0.0
    %516 = vmatpush2.msra.mxu0 0.0
    %517 = vmatprep.mubr.f32.mxu0 0.0
    %518 = vmatmul.mubr.f32.gmra.mxu0 %v447
    %v519 = vpop.f32.mrf.mxu0
    %v520 = vadd.f32 0.0, %v519
    %v521 = vpop.f32.mrf.mxu0
    %v522 = vadd.f32 0.0, %v521
    %523 = vdwg.mxu0
    %v524 = vadd.f32 %v435, %v520
    %v525 = vadd.f32 %v436, %v522
    %526 = vrot.lane.b32.xlu0 %v54, 110
    %v527 = vpop.permute.xlu0 %526
    %528 = vrot.lane.b32.xlu0 %v65, 110
    %v529 = vpop.permute.xlu0 %528
    %530 = vrot.lane.b32.xlu0 %v55, 110
    %v531 = vpop.permute.xlu0 %530
    %vm532 = vcmask 900096
    %v533 = vsel %vm532, %v527, %v529
    %v534 = vsel %vm532, %v529, %v531
    %v537 = vsel %vm245, %v533, 0.0
    %v538 = vsel %vm246, %v534, 0.0
    %v540 = vsel %vm79, %v23, 0
    %v543 = vsel %vm83, %v537, 0
    %v546 = vsel %vm83, %v538, 0
    %548 = vmatprep.subr.mxu0 0.0
    %549 = vmatpush1.msra.mxu0 0.0
    %550 = vmatprep.subr.mxu0 0.0
    %551 = vmatpush1.msra.mxu0 0.0
    %552 = vmatprep.subr.mxu0 0.0
    %553 = vmatpush1.msra.mxu0 0.0
    %554 = vmatprep.subr.mxu0 0.0
    %555 = vmatpush1.msra.mxu0 0.0
    %556 = vmatprep.subr.mxu0 0.0
    %557 = vmatpush1.msra.mxu0 0.0
    %558 = vmatprep.subr.mxu0 0.0
    %559 = vmatpush1.msra.mxu0 0.0
    %560 = vmatprep.subr.mxu0 0.0
    %561 = vmatpush1.msra.mxu0 0.0
    %562 = vmatprep.subr.mxu0 0.0
    %563 = vmatpush1.msra.mxu0 0.0
    %564 = vmatprep.subr.mxu0 0.0
    %565 = vmatpush1.msra.mxu0 0.0
    %566 = vmatprep.subr.mxu0 0.0
    %567 = vmatpush1.msra.mxu0 0.0
    %568 = vmatprep.subr.mxu0 0.0
    %569 = vmatpush1.msra.mxu0 0.0
    %570 = vmatprep.subr.mxu0 0.0
    %571 = vmatpush1.msra.mxu0 0.0
    %572 = vmatprep.subr.mxu0 0.0
    %573 = vmatpush1.msra.mxu0 0.0
    %574 = vmatprep.subr.mxu0 0.0
    %575 = vmatpush1.msra.mxu0 0.0
    %576 = vmatprep.subr.mxu0 0.0
    %577 = vmatpush1.msra.mxu0 0.0
    %578 = vmatprep.subr.mxu0 %v546
    %579 = vmatpush1.msra.mxu0 %v543
    %580 = vmatprep.subr.mxu0 0.0
    %581 = vmatpush2.msra.mxu0 0.0
    %582 = vmatprep.subr.mxu0 0.0
    %583 = vmatpush2.msra.mxu0 0.0
    %584 = vmatprep.subr.mxu0 0.0
    %585 = vmatpush2.msra.mxu0 0.0
    %586 = vmatprep.subr.mxu0 0.0
    %587 = vmatpush2.msra.mxu0 0.0
    %588 = vmatprep.subr.mxu0 0.0
    %589 = vmatpush2.msra.mxu0 0.0
    %590 = vmatprep.subr.mxu0 0.0
    %591 = vmatpush2.msra.mxu0 0.0
    %592 = vmatprep.subr.mxu0 0.0
    %593 = vmatpush2.msra.mxu0 0.0
    %594 = vmatprep.subr.mxu0 0.0
    %595 = vmatpush2.msra.mxu0 0.0
    %596 = vmatprep.subr.mxu0 0.0
    %597 = vmatpush2.msra.mxu0 0.0
    %598 = vmatprep.subr.mxu0 0.0
    %599 = vmatpush2.msra.mxu0 0.0
    %600 = vmatprep.subr.mxu0 0.0
    %601 = vmatpush2.msra.mxu0 0.0
    %602 = vmatprep.subr.mxu0 0.0
    %603 = vmatpush2.msra.mxu0 0.0
    %604 = vmatprep.subr.mxu0 0.0
    %605 = vmatpush2.msra.mxu0 0.0
    %606 = vmatprep.subr.mxu0 0.0
    %607 = vmatpush2.msra.mxu0 0.0
    %608 = vmatprep.subr.mxu0 0.0
    %609 = vmatpush2.msra.mxu0 0.0
    %610 = vmatprep.subr.mxu0 0.0
    %611 = vmatpush2.msra.mxu0 0.0
    %612 = vmatprep.mubr.f32.mxu0 0.0
    %613 = vmatmul.mubr.f32.gmra.mxu0 %v540
    %v614 = vpop.f32.mrf.mxu0
    %v615 = vadd.f32 0.0, %v614
    %v616 = vpop.f32.mrf.mxu0
    %v617 = vadd.f32 0.0, %v616
    %618 = vdwg.mxu0
    %v619 = vadd.f32 %v524, %v615
    %v620 = vadd.f32 %v525, %v617
    %621 = vrot.lane.b32.xlu0 %v54, 96
    %v622 = vpop.permute.xlu0 %621
    %623 = vrot.lane.b32.xlu0 %v65, 96
    %v624 = vpop.permute.xlu0 %623
    %625 = vrot.lane.b32.xlu0 %v55, 96
    %v626 = vpop.permute.xlu0 %625
    %vm627 = vcmask 785408
    %v628 = vsel %vm627, %v622, %v624
    %v629 = vsel %vm627, %v624, %v626
    %v632 = vsel %vm62, %v628, 0.0
    %v633 = vsel %vm63, %v629, 0.0
    %v635 = vsel %vm79, %v24, 0
    %v638 = vsel %vm83, %v632, 0
    %v641 = vsel %vm83, %v633, 0
    %643 = vmatprep.subr.mxu0 0.0
    %644 = vmatpush1.msra.mxu0 0.0
    %645 = vmatprep.subr.mxu0 0.0
    %646 = vmatpush1.msra.mxu0 0.0
    %647 = vmatprep.subr.mxu0 0.0
    %648 = vmatpush1.msra.mxu0 0.0
    %649 = vmatprep.subr.mxu0 0.0
    %650 = vmatpush1.msra.mxu0 0.0
    %651 = vmatprep.subr.mxu0 0.0
    %652 = vmatpush1.msra.mxu0 0.0
    %653 = vmatprep.subr.mxu0 0.0
    %654 = vmatpush1.msra.mxu0 0.0
    %655 = vmatprep.subr.mxu0 0.0
    %656 = vmatpush1.msra.mxu0 0.0
    %657 = vmatprep.subr.mxu0 0.0
    %658 = vmatpush1.msra.mxu0 0.0
    %659 = vmatprep.subr.mxu0 0.0
    %660 = vmatpush1.msra.mxu0 0.0
    %661 = vmatprep.subr.mxu0 0.0
    %662 = vmatpush1.msra.mxu0 0.0
    %663 = vmatprep.subr.mxu0 0.0
    %664 = vmatpush1.msra.mxu0 0.0
    %665 = vmatprep.subr.mxu0 0.0
    %666 = vmatpush1.msra.mxu0 0.0
    %667 = vmatprep.subr.mxu0 0.0
    %668 = vmatpush1.msra.mxu0 0.0
    %669 = vmatprep.subr.mxu0 0.0
    %670 = vmatpush1.msra.mxu0 0.0
    %671 = vmatprep.subr.mxu0 0.0
    %672 = vmatpush1.msra.mxu0 0.0
    %673 = vmatprep.subr.mxu0 %v641
    %674 = vmatpush1.msra.mxu0 %v638
    %675 = vmatprep.subr.mxu0 0.0
    %676 = vmatpush2.msra.mxu0 0.0
    %677 = vmatprep.subr.mxu0 0.0
    %678 = vmatpush2.msra.mxu0 0.0
    %679 = vmatprep.subr.mxu0 0.0
    %680 = vmatpush2.msra.mxu0 0.0
    %681 = vmatprep.subr.mxu0 0.0
    %682 = vmatpush2.msra.mxu0 0.0
    %683 = vmatprep.subr.mxu0 0.0
    %684 = vmatpush2.msra.mxu0 0.0
    %685 = vmatprep.subr.mxu0 0.0
    %686 = vmatpush2.msra.mxu0 0.0
    %687 = vmatprep.subr.mxu0 0.0
    %688 = vmatpush2.msra.mxu0 0.0
    %689 = vmatprep.subr.mxu0 0.0
    %690 = vmatpush2.msra.mxu0 0.0
    %691 = vmatprep.subr.mxu0 0.0
    %692 = vmatpush2.msra.mxu0 0.0
    %693 = vmatprep.subr.mxu0 0.0
    %694 = vmatpush2.msra.mxu0 0.0
    %695 = vmatprep.subr.mxu0 0.0
    %696 = vmatpush2.msra.mxu0 0.0
    %697 = vmatprep.subr.mxu0 0.0
    %698 = vmatpush2.msra.mxu0 0.0
    %699 = vmatprep.subr.mxu0 0.0
    %700 = vmatpush2.msra.mxu0 0.0
    %701 = vmatprep.subr.mxu0 0.0
    %702 = vmatpush2.msra.mxu0 0.0
    %703 = vmatprep.subr.mxu0 0.0
    %704 = vmatpush2.msra.mxu0 0.0
    %705 = vmatprep.subr.mxu0 0.0
    %706 = vmatpush2.msra.mxu0 0.0
    %707 = vmatprep.mubr.f32.mxu0 0.0
    %708 = vmatmul.mubr.f32.gmra.mxu0 %v635
    %v709 = vpop.f32.mrf.mxu0
    %v710 = vadd.f32 0.0, %v709
    %v711 = vpop.f32.mrf.mxu0
    %v712 = vadd.f32 0.0, %v711
    %713 = vdwg.mxu0
    %v714 = vadd.f32 %v619, %v710
    %v715 = vadd.f32 %v620, %v712
    %716 = vrot.lane.b32.xlu0 %v54, 95
    %v717 = vpop.permute.xlu0 %716
    %718 = vrot.lane.b32.xlu0 %v65, 95
    %v719 = vpop.permute.xlu0 %718
    %720 = vrot.lane.b32.xlu0 %v55, 95
    %v721 = vpop.permute.xlu0 %720
    %vm722 = vcmask 777216
    %v723 = vsel %vm722, %v717, %v719
    %v724 = vsel %vm722, %v719, %v721
    %v726 = vsel %vm79, %v25, 0
    %v728 = vsel %vm83, %v723, 0
    %v730 = vsel %vm83, %v724, 0
    %732 = vmatprep.subr.mxu0 0.0
    %733 = vmatpush1.msra.mxu0 0.0
    %734 = vmatprep.subr.mxu0 0.0
    %735 = vmatpush1.msra.mxu0 0.0
    %736 = vmatprep.subr.mxu0 0.0
    %737 = vmatpush1.msra.mxu0 0.0
    %738 = vmatprep.subr.mxu0 0.0
    %739 = vmatpush1.msra.mxu0 0.0
    %740 = vmatprep.subr.mxu0 0.0
    %741 = vmatpush1.msra.mxu0 0.0
    %742 = vmatprep.subr.mxu0 0.0
    %743 = vmatpush1.msra.mxu0 0.0
    %744 = vmatprep.subr.mxu0 0.0
    %745 = vmatpush1.msra.mxu0 0.0
    %746 = vmatprep.subr.mxu0 0.0
    %747 = vmatpush1.msra.mxu0 0.0
    %748 = vmatprep.subr.mxu0 0.0
    %749 = vmatpush1.msra.mxu0 0.0
    %750 = vmatprep.subr.mxu0 0.0
    %751 = vmatpush1.msra.mxu0 0.0
    %752 = vmatprep.subr.mxu0 0.0
    %753 = vmatpush1.msra.mxu0 0.0
    %754 = vmatprep.subr.mxu0 0.0
    %755 = vmatpush1.msra.mxu0 0.0
    %756 = vmatprep.subr.mxu0 0.0
    %757 = vmatpush1.msra.mxu0 0.0
    %758 = vmatprep.subr.mxu0 0.0
    %759 = vmatpush1.msra.mxu0 0.0
    %760 = vmatprep.subr.mxu0 0.0
    %761 = vmatpush1.msra.mxu0 0.0
    %762 = vmatprep.subr.mxu0 %v730
    %763 = vmatpush1.msra.mxu0 %v728
    %764 = vmatprep.subr.mxu0 0.0
    %765 = vmatpush2.msra.mxu0 0.0
    %766 = vmatprep.subr.mxu0 0.0
    %767 = vmatpush2.msra.mxu0 0.0
    %768 = vmatprep.subr.mxu0 0.0
    %769 = vmatpush2.msra.mxu0 0.0
    %770 = vmatprep.subr.mxu0 0.0
    %771 = vmatpush2.msra.mxu0 0.0
    %772 = vmatprep.subr.mxu0 0.0
    %773 = vmatpush2.msra.mxu0 0.0
    %774 = vmatprep.subr.mxu0 0.0
    %775 = vmatpush2.msra.mxu0 0.0
    %776 = vmatprep.subr.mxu0 0.0
    %777 = vmatpush2.msra.mxu0 0.0
    %778 = vmatprep.subr.mxu0 0.0
    %779 = vmatpush2.msra.mxu0 0.0
    %780 = vmatprep.subr.mxu0 0.0
    %781 = vmatpush2.msra.mxu0 0.0
    %782 = vmatprep.subr.mxu0 0.0
    %783 = vmatpush2.msra.mxu0 0.0
    %784 = vmatprep.subr.mxu0 0.0
    %785 = vmatpush2.msra.mxu0 0.0
    %786 = vmatprep.subr.mxu0 0.0
    %787 = vmatpush2.msra.mxu0 0.0
    %788 = vmatprep.subr.mxu0 0.0
    %789 = vmatpush2.msra.mxu0 0.0
    %790 = vmatprep.subr.mxu0 0.0
    %791 = vmatpush2.msra.mxu0 0.0
    %792 = vmatprep.subr.mxu0 0.0
    %793 = vmatpush2.msra.mxu0 0.0
    %794 = vmatprep.subr.mxu0 0.0
    %795 = vmatpush2.msra.mxu0 0.0
    %796 = vmatprep.mubr.f32.mxu0 0.0
    %797 = vmatmul.mubr.f32.gmra.mxu0 %v726
    %v798 = vpop.f32.mrf.mxu0
    %v799 = vadd.f32 0.0, %v798
    %v800 = vpop.f32.mrf.mxu0
    %v801 = vadd.f32 0.0, %v800
    %802 = vdwg.mxu0
    %v803 = vadd.f32 %v714, %v799
    %v804 = vadd.f32 %v715, %v801
    %805 = vrot.lane.b32.xlu0 %v54, 94
    %v806 = vpop.permute.xlu0 %805
    %807 = vrot.lane.b32.xlu0 %v65, 94
    %v808 = vpop.permute.xlu0 %807
    %809 = vrot.lane.b32.xlu0 %v55, 94
    %v810 = vpop.permute.xlu0 %809
    %vm811 = vcmask 769024
    %v812 = vsel %vm811, %v806, %v808
    %v813 = vsel %vm811, %v808, %v810
    %v816 = vsel %vm245, %v812, 0.0
    %v817 = vsel %vm246, %v813, 0.0
    %v819 = vsel %vm79, %v26, 0
    %v822 = vsel %vm83, %v816, 0
    %v825 = vsel %vm83, %v817, 0
    %827 = vmatprep.subr.mxu0 0.0
    %828 = vmatpush1.msra.mxu0 0.0
    %829 = vmatprep.subr.mxu0 0.0
    %830 = vmatpush1.msra.mxu0 0.0
    %831 = vmatprep.subr.mxu0 0.0
    %832 = vmatpush1.msra.mxu0 0.0
    %833 = vmatprep.subr.mxu0 0.0
    %834 = vmatpush1.msra.mxu0 0.0
    %835 = vmatprep.subr.mxu0 0.0
    %836 = vmatpush1.msra.mxu0 0.0
    %837 = vmatprep.subr.mxu0 0.0
    %838 = vmatpush1.msra.mxu0 0.0
    %839 = vmatprep.subr.mxu0 0.0
    %840 = vmatpush1.msra.mxu0 0.0
    %841 = vmatprep.subr.mxu0 0.0
    %842 = vmatpush1.msra.mxu0 0.0
    %843 = vmatprep.subr.mxu0 0.0
    %844 = vmatpush1.msra.mxu0 0.0
    %845 = vmatprep.subr.mxu0 0.0
    %846 = vmatpush1.msra.mxu0 0.0
    %847 = vmatprep.subr.mxu0 0.0
    %848 = vmatpush1.msra.mxu0 0.0
    %849 = vmatprep.subr.mxu0 0.0
    %850 = vmatpush1.msra.mxu0 0.0
    %851 = vmatprep.subr.mxu0 0.0
    %852 = vmatpush1.msra.mxu0 0.0
    %853 = vmatprep.subr.mxu0 0.0
    %854 = vmatpush1.msra.mxu0 0.0
    %855 = vmatprep.subr.mxu0 0.0
    %856 = vmatpush1.msra.mxu0 0.0
    %857 = vmatprep.subr.mxu0 %v825
    %858 = vmatpush1.msra.mxu0 %v822
    %859 = vmatprep.subr.mxu0 0.0
    %860 = vmatpush2.msra.mxu0 0.0
    %861 = vmatprep.subr.mxu0 0.0
    %862 = vmatpush2.msra.mxu0 0.0
    %863 = vmatprep.subr.mxu0 0.0
    %864 = vmatpush2.msra.mxu0 0.0
    %865 = vmatprep.subr.mxu0 0.0
    %866 = vmatpush2.msra.mxu0 0.0
    %867 = vmatprep.subr.mxu0 0.0
    %868 = vmatpush2.msra.mxu0 0.0
    %869 = vmatprep.subr.mxu0 0.0
    %870 = vmatpush2.msra.mxu0 0.0
    %871 = vmatprep.subr.mxu0 0.0
    %872 = vmatpush2.msra.mxu0 0.0
    %873 = vmatprep.subr.mxu0 0.0
    %874 = vmatpush2.msra.mxu0 0.0
    %875 = vmatprep.subr.mxu0 0.0
    %876 = vmatpush2.msra.mxu0 0.0
    %877 = vmatprep.subr.mxu0 0.0
    %878 = vmatpush2.msra.mxu0 0.0
    %879 = vmatprep.subr.mxu0 0.0
    %880 = vmatpush2.msra.mxu0 0.0
    %881 = vmatprep.subr.mxu0 0.0
    %882 = vmatpush2.msra.mxu0 0.0
    %883 = vmatprep.subr.mxu0 0.0
    %884 = vmatpush2.msra.mxu0 0.0
    %885 = vmatprep.subr.mxu0 0.0
    %886 = vmatpush2.msra.mxu0 0.0
    %887 = vmatprep.subr.mxu0 0.0
    %888 = vmatpush2.msra.mxu0 0.0
    %889 = vmatprep.subr.mxu0 0.0
    %890 = vmatpush2.msra.mxu0 0.0
    %891 = vmatprep.mubr.f32.mxu0 0.0
    %892 = vmatmul.mubr.f32.gmra.mxu0 %v819
    %v893 = vpop.f32.mrf.mxu0
    %v894 = vadd.f32 0.0, %v893
    %v895 = vpop.f32.mrf.mxu0
    %v896 = vadd.f32 0.0, %v895
    %897 = vdwg.mxu0
    %v898 = vadd.f32 %v803, %v894
    %v899 = vadd.f32 %v804, %v896
    %s900 = scalar_lea.vmem %s0, 12
    %v901 = vld [vmem:[%s900] sm:$0xff]
    %v902 = vld [vmem:[%s900 + $0x8] sm:$0xf]
    %v904 = vcombine.high %v901, %v901
    %v906 = vsel %vm62, %v901, 0.0
    %v907 = vsel %vm63, %v904, 0.0
    %909 = vrot.lane.b32.xlu0 %v901, 127
    %v910 = vpop.permute.xlu0 %909
    %911 = vrot.lane.b32.xlu0 %v904, 127
    %v912 = vpop.permute.xlu0 %911
    %913 = vrot.lane.b32.xlu0 %v902, 127
    %v914 = vpop.permute.xlu0 %913
    %v915 = vsel %vm76, %v910, %v912
    %v916 = vsel %vm76, %v912, %v914
    %v917 = vsel %vm83, %v915, 0
    %v919 = vsel %vm83, %v916, 0
    %921 = vmatprep.subr.mxu0 0.0
    %922 = vmatpush1.msra.mxu0 0.0
    %923 = vmatprep.subr.mxu0 0.0
    %924 = vmatpush1.msra.mxu0 0.0
    %925 = vmatprep.subr.mxu0 0.0
    %926 = vmatpush1.msra.mxu0 0.0
    %927 = vmatprep.subr.mxu0 0.0
    %928 = vmatpush1.msra.mxu0 0.0
    %929 = vmatprep.subr.mxu0 0.0
    %930 = vmatpush1.msra.mxu0 0.0
    %931 = vmatprep.subr.mxu0 0.0
    %932 = vmatpush1.msra.mxu0 0.0
    %933 = vmatprep.subr.mxu0 0.0
    %934 = vmatpush1.msra.mxu0 0.0
    %935 = vmatprep.subr.mxu0 0.0
    %936 = vmatpush1.msra.mxu0 0.0
    %937 = vmatprep.subr.mxu0 0.0
    %938 = vmatpush1.msra.mxu0 0.0
    %939 = vmatprep.subr.mxu0 0.0
    %940 = vmatpush1.msra.mxu0 0.0
    %941 = vmatprep.subr.mxu0 0.0
    %942 = vmatpush1.msra.mxu0 0.0
    %943 = vmatprep.subr.mxu0 0.0
    %944 = vmatpush1.msra.mxu0 0.0
    %945 = vmatprep.subr.mxu0 0.0
    %946 = vmatpush1.msra.mxu0 0.0
    %947 = vmatprep.subr.mxu0 0.0
    %948 = vmatpush1.msra.mxu0 0.0
    %949 = vmatprep.subr.mxu0 0.0
    %950 = vmatpush1.msra.mxu0 0.0
    %951 = vmatprep.subr.mxu0 %v919
    %952 = vmatpush1.msra.mxu0 %v917
    %953 = vmatprep.subr.mxu0 0.0
    %954 = vmatpush2.msra.mxu0 0.0
    %955 = vmatprep.subr.mxu0 0.0
    %956 = vmatpush2.msra.mxu0 0.0
    %957 = vmatprep.subr.mxu0 0.0
    %958 = vmatpush2.msra.mxu0 0.0
    %959 = vmatprep.subr.mxu0 0.0
    %960 = vmatpush2.msra.mxu0 0.0
    %961 = vmatprep.subr.mxu0 0.0
    %962 = vmatpush2.msra.mxu0 0.0
    %963 = vmatprep.subr.mxu0 0.0
    %964 = vmatpush2.msra.mxu0 0.0
    %965 = vmatprep.subr.mxu0 0.0
    %966 = vmatpush2.msra.mxu0 0.0
    %967 = vmatprep.subr.mxu0 0.0
    %968 = vmatpush2.msra.mxu0 0.0
    %969 = vmatprep.subr.mxu0 0.0
    %970 = vmatpush2.msra.mxu0 0.0
    %971 = vmatprep.subr.mxu0 0.0
    %972 = vmatpush2.msra.mxu0 0.0
    %973 = vmatprep.subr.mxu0 0.0
    %974 = vmatpush2.msra.mxu0 0.0
    %975 = vmatprep.subr.mxu0 0.0
    %976 = vmatpush2.msra.mxu0 0.0
    %977 = vmatprep.subr.mxu0 0.0
    %978 = vmatpush2.msra.mxu0 0.0
    %979 = vmatprep.subr.mxu0 0.0
    %980 = vmatpush2.msra.mxu0 0.0
    %981 = vmatprep.subr.mxu0 0.0
    %982 = vmatpush2.msra.mxu0 0.0
    %983 = vmatprep.subr.mxu0 0.0
    %984 = vmatpush2.msra.mxu0 0.0
    %985 = vmatprep.mubr.f32.mxu0 0.0
    %986 = vmatmul.mubr.f32.gmra.mxu0 %v81
    %v987 = vpop.f32.mrf.mxu0
    %v988 = vadd.f32 0.0, %v987
    %v989 = vpop.f32.mrf.mxu0
    %v990 = vadd.f32 0.0, %v989
    %991 = vdwg.mxu0
    %v993 = vsel %vm83, %v906, 0
    %v996 = vsel %vm83, %v907, 0
    %998 = vmatprep.subr.mxu0 0.0
    %999 = vmatpush1.msra.mxu0 0.0
    %1000 = vmatprep.subr.mxu0 0.0
    %1001 = vmatpush1.msra.mxu0 0.0
    %1002 = vmatprep.subr.mxu0 0.0
    %1003 = vmatpush1.msra.mxu0 0.0
    %1004 = vmatprep.subr.mxu0 0.0
    %1005 = vmatpush1.msra.mxu0 0.0
    %1006 = vmatprep.subr.mxu0 0.0
    %1007 = vmatpush1.msra.mxu0 0.0
    %1008 = vmatprep.subr.mxu0 0.0
    %1009 = vmatpush1.msra.mxu0 0.0
    %1010 = vmatprep.subr.mxu0 0.0
    %1011 = vmatpush1.msra.mxu0 0.0
    %1012 = vmatprep.subr.mxu0 0.0
    %1013 = vmatpush1.msra.mxu0 0.0
    %1014 = vmatprep.subr.mxu0 0.0
    %1015 = vmatpush1.msra.mxu0 0.0
    %1016 = vmatprep.subr.mxu0 0.0
    %1017 = vmatpush1.msra.mxu0 0.0
    %1018 = vmatprep.subr.mxu0 0.0
    %1019 = vmatpush1.msra.mxu0 0.0
    %1020 = vmatprep.subr.mxu0 0.0
    %1021 = vmatpush1.msra.mxu0 0.0
    %1022 = vmatprep.subr.mxu0 0.0
    %1023 = vmatpush1.msra.mxu0 0.0
    %1024 = vmatprep.subr.mxu0 0.0
    %1025 = vmatpush1.msra.mxu0 0.0
    %1026 = vmatprep.subr.mxu0 0.0
    %1027 = vmatpush1.msra.mxu0 0.0
    %1028 = vmatprep.subr.mxu0 %v996
    %1029 = vmatpush1.msra.mxu0 %v993
    %1030 = vmatprep.subr.mxu0 0.0
    %1031 = vmatpush2.msra.mxu0 0.0
    %1032 = vmatprep.subr.mxu0 0.0
    %1033 = vmatpush2.msra.mxu0 0.0
    %1034 = vmatprep.subr.mxu0 0.0
    %1035 = vmatpush2.msra.mxu0 0.0
    %1036 = vmatprep.subr.mxu0 0.0
    %1037 = vmatpush2.msra.mxu0 0.0
    %1038 = vmatprep.subr.mxu0 0.0
    %1039 = vmatpush2.msra.mxu0 0.0
    %1040 = vmatprep.subr.mxu0 0.0
    %1041 = vmatpush2.msra.mxu0 0.0
    %1042 = vmatprep.subr.mxu0 0.0
    %1043 = vmatpush2.msra.mxu0 0.0
    %1044 = vmatprep.subr.mxu0 0.0
    %1045 = vmatpush2.msra.mxu0 0.0
    %1046 = vmatprep.subr.mxu0 0.0
    %1047 = vmatpush2.msra.mxu0 0.0
    %1048 = vmatprep.subr.mxu0 0.0
    %1049 = vmatpush2.msra.mxu0 0.0
    %1050 = vmatprep.subr.mxu0 0.0
    %1051 = vmatpush2.msra.mxu0 0.0
    %1052 = vmatprep.subr.mxu0 0.0
    %1053 = vmatpush2.msra.mxu0 0.0
    %1054 = vmatprep.subr.mxu0 0.0
    %1055 = vmatpush2.msra.mxu0 0.0
    %1056 = vmatprep.subr.mxu0 0.0
    %1057 = vmatpush2.msra.mxu0 0.0
    %1058 = vmatprep.subr.mxu0 0.0
    %1059 = vmatpush2.msra.mxu0 0.0
    %1060 = vmatprep.subr.mxu0 0.0
    %1061 = vmatpush2.msra.mxu0 0.0
    %1062 = vmatprep.mubr.f32.mxu0 0.0
    %1063 = vmatmul.mubr.f32.gmra.mxu0 %v160
    %v1064 = vpop.f32.mrf.mxu0
    %v1065 = vadd.f32 %v988, %v1064
    %v1066 = vpop.f32.mrf.mxu0
    %v1067 = vadd.f32 %v990, %v1066
    %1068 = vdwg.mxu0
    %1069 = vrot.lane.b32.xlu0 %v901, 126
    %v1070 = vpop.permute.xlu0 %1069
    %1071 = vrot.lane.b32.xlu0 %v904, 126
    %v1072 = vpop.permute.xlu0 %1071
    %1073 = vrot.lane.b32.xlu0 %v902, 126
    %v1074 = vpop.permute.xlu0 %1073
    %v1075 = vsel %vm253, %v1070, %v1072
    %v1076 = vsel %vm253, %v1072, %v1074
    %v1079 = vsel %vm245, %v1075, 0.0
    %v1080 = vsel %vm246, %v1076, 0.0
    %v1082 = vsel %vm83, %v1079, 0
    %v1085 = vsel %vm83, %v1080, 0
    %1087 = vmatprep.subr.mxu0 0.0
    %1088 = vmatpush1.msra.mxu0 0.0
    %1089 = vmatprep.subr.mxu0 0.0
    %1090 = vmatpush1.msra.mxu0 0.0
    %1091 = vmatprep.subr.mxu0 0.0
    %1092 = vmatpush1.msra.mxu0 0.0
    %1093 = vmatprep.subr.mxu0 0.0
    %1094 = vmatpush1.msra.mxu0 0.0
    %1095 = vmatprep.subr.mxu0 0.0
    %1096 = vmatpush1.msra.mxu0 0.0
    %1097 = vmatprep.subr.mxu0 0.0
    %1098 = vmatpush1.msra.mxu0 0.0
    %1099 = vmatprep.subr.mxu0 0.0
    %1100 = vmatpush1.msra.mxu0 0.0
    %1101 = vmatprep.subr.mxu0 0.0
    %1102 = vmatpush1.msra.mxu0 0.0
    %1103 = vmatprep.subr.mxu0 0.0
    %1104 = vmatpush1.msra.mxu0 0.0
    %1105 = vmatprep.subr.mxu0 0.0
    %1106 = vmatpush1.msra.mxu0 0.0
    %1107 = vmatprep.subr.mxu0 0.0
    %1108 = vmatpush1.msra.mxu0 0.0
    %1109 = vmatprep.subr.mxu0 0.0
    %1110 = vmatpush1.msra.mxu0 0.0
    %1111 = vmatprep.subr.mxu0 0.0
    %1112 = vmatpush1.msra.mxu0 0.0
    %1113 = vmatprep.subr.mxu0 0.0
    %1114 = vmatpush1.msra.mxu0 0.0
    %1115 = vmatprep.subr.mxu0 0.0
    %1116 = vmatpush1.msra.mxu0 0.0
    %1117 = vmatprep.subr.mxu0 %v1085
    %1118 = vmatpush1.msra.mxu0 %v1082
    %1119 = vmatprep.subr.mxu0 0.0
    %1120 = vmatpush2.msra.mxu0 0.0
    %1121 = vmatprep.subr.mxu0 0.0
    %1122 = vmatpush2.msra.mxu0 0.0
    %1123 = vmatprep.subr.mxu0 0.0
    %1124 = vmatpush2.msra.mxu0 0.0
    %1125 = vmatprep.subr.mxu0 0.0
    %1126 = vmatpush2.msra.mxu0 0.0
    %1127 = vmatprep.subr.mxu0 0.0
    %1128 = vmatpush2.msra.mxu0 0.0
    %1129 = vmatprep.subr.mxu0 0.0
    %1130 = vmatpush2.msra.mxu0 0.0
    %1131 = vmatprep.subr.mxu0 0.0
    %1132 = vmatpush2.msra.mxu0 0.0
    %1133 = vmatprep.subr.mxu0 0.0
    %1134 = vmatpush2.msra.mxu0 0.0
    %1135 = vmatprep.subr.mxu0 0.0
    %1136 = vmatpush2.msra.mxu0 0.0
    %1137 = vmatprep.subr.mxu0 0.0
    %1138 = vmatpush2.msra.mxu0 0.0
    %1139 = vmatprep.subr.mxu0 0.0
    %1140 = vmatpush2.msra.mxu0 0.0
    %1141 = vmatprep.subr.mxu0 0.0
    %1142 = vmatpush2.msra.mxu0 0.0
    %1143 = vmatprep.subr.mxu0 0.0
    %1144 = vmatpush2.msra.mxu0 0.0
    %1145 = vmatprep.subr.mxu0 0.0
    %1146 = vmatpush2.msra.mxu0 0.0
    %1147 = vmatprep.subr.mxu0 0.0
    %1148 = vmatpush2.msra.mxu0 0.0
    %1149 = vmatprep.subr.mxu0 0.0
    %1150 = vmatpush2.msra.mxu0 0.0
    %1151 = vmatprep.mubr.f32.mxu0 0.0
    %1152 = vmatmul.mubr.f32.gmra.mxu0 %v261
    %v1153 = vpop.f32.mrf.mxu0
    %v1154 = vadd.f32 0.0, %v1153
    %v1155 = vpop.f32.mrf.mxu0
    %v1156 = vadd.f32 0.0, %v1155
    %1157 = vdwg.mxu0
    %v1158 = vadd.f32 %v1065, %v1154
    %v1159 = vadd.f32 %v1067, %v1156
    %1160 = vrot.lane.b32.xlu0 %v901, 112
    %v1161 = vpop.permute.xlu0 %1160
    %1162 = vrot.lane.b32.xlu0 %v904, 112
    %v1163 = vpop.permute.xlu0 %1162
    %1164 = vrot.lane.b32.xlu0 %v902, 112
    %v1165 = vpop.permute.xlu0 %1164
    %v1166 = vsel %vm348, %v1161, %v1163
    %v1167 = vsel %vm348, %v1163, %v1165
    %v1170 = vsel %vm62, %v1166, 0.0
    %v1171 = vsel %vm63, %v1167, 0.0
    %v1173 = vsel %vm83, %v1170, 0
    %v1176 = vsel %vm83, %v1171, 0
    %1178 = vmatprep.subr.mxu0 0.0
    %1179 = vmatpush1.msra.mxu0 0.0
    %1180 = vmatprep.subr.mxu0 0.0
    %1181 = vmatpush1.msra.mxu0 0.0
    %1182 = vmatprep.subr.mxu0 0.0
    %1183 = vmatpush1.msra.mxu0 0.0
    %1184 = vmatprep.subr.mxu0 0.0
    %1185 = vmatpush1.msra.mxu0 0.0
    %1186 = vmatprep.subr.mxu0 0.0
    %1187 = vmatpush1.msra.mxu0 0.0
    %1188 = vmatprep.subr.mxu0 0.0
    %1189 = vmatpush1.msra.mxu0 0.0
    %1190 = vmatprep.subr.mxu0 0.0
    %1191 = vmatpush1.msra.mxu0 0.0
    %1192 = vmatprep.subr.mxu0 0.0
    %1193 = vmatpush1.msra.mxu0 0.0
    %1194 = vmatprep.subr.mxu0 0.0
    %1195 = vmatpush1.msra.mxu0 0.0
    %1196 = vmatprep.subr.mxu0 0.0
    %1197 = vmatpush1.msra.mxu0 0.0
    %1198 = vmatprep.subr.mxu0 0.0
    %1199 = vmatpush1.msra.mxu0 0.0
    %1200 = vmatprep.subr.mxu0 0.0
    %1201 = vmatpush1.msra.mxu0 0.0
    %1202 = vmatprep.subr.mxu0 0.0
    %1203 = vmatpush1.msra.mxu0 0.0
    %1204 = vmatprep.subr.mxu0 0.0
    %1205 = vmatpush1.msra.mxu0 0.0
    %1206 = vmatprep.subr.mxu0 0.0
    %1207 = vmatpush1.msra.mxu0 0.0
    %1208 = vmatprep.subr.mxu0 %v1176
    %1209 = vmatpush1.msra.mxu0 %v1173
    %1210 = vmatprep.subr.mxu0 0.0
    %1211 = vmatpush2.msra.mxu0 0.0
    %1212 = vmatprep.subr.mxu0 0.0
    %1213 = vmatpush2.msra.mxu0 0.0
    %1214 = vmatprep.subr.mxu0 0.0
    %1215 = vmatpush2.msra.mxu0 0.0
    %1216 = vmatprep.subr.mxu0 0.0
    %1217 = vmatpush2.msra.mxu0 0.0
    %1218 = vmatprep.subr.mxu0 0.0
    %1219 = vmatpush2.msra.mxu0 0.0
    %1220 = vmatprep.subr.mxu0 0.0
    %1221 = vmatpush2.msra.mxu0 0.0
    %1222 = vmatprep.subr.mxu0 0.0
    %1223 = vmatpush2.msra.mxu0 0.0
    %1224 = vmatprep.subr.mxu0 0.0
    %1225 = vmatpush2.msra.mxu0 0.0
    %1226 = vmatprep.subr.mxu0 0.0
    %1227 = vmatpush2.msra.mxu0 0.0
    %1228 = vmatprep.subr.mxu0 0.0
    %1229 = vmatpush2.msra.mxu0 0.0
    %1230 = vmatprep.subr.mxu0 0.0
    %1231 = vmatpush2.msra.mxu0 0.0
    %1232 = vmatprep.subr.mxu0 0.0
    %1233 = vmatpush2.msra.mxu0 0.0
    %1234 = vmatprep.subr.mxu0 0.0
    %1235 = vmatpush2.msra.mxu0 0.0
    %1236 = vmatprep.subr.mxu0 0.0
    %1237 = vmatpush2.msra.mxu0 0.0
    %1238 = vmatprep.subr.mxu0 0.0
    %1239 = vmatpush2.msra.mxu0 0.0
    %1240 = vmatprep.subr.mxu0 0.0
    %1241 = vmatpush2.msra.mxu0 0.0
    %1242 = vmatprep.mubr.f32.mxu0 0.0
    %1243 = vmatmul.mubr.f32.gmra.mxu0 %v356
    %v1244 = vpop.f32.mrf.mxu0
    %v1245 = vadd.f32 0.0, %v1244
    %v1246 = vpop.f32.mrf.mxu0
    %v1247 = vadd.f32 0.0, %v1246
    %1248 = vdwg.mxu0
    %v1249 = vadd.f32 %v1158, %v1245
    %v1250 = vadd.f32 %v1159, %v1247
    %1251 = vrot.lane.b32.xlu0 %v901, 111
    %v1252 = vpop.permute.xlu0 %1251
    %1253 = vrot.lane.b32.xlu0 %v904, 111
    %v1254 = vpop.permute.xlu0 %1253
    %1255 = vrot.lane.b32.xlu0 %v902, 111
    %v1256 = vpop.permute.xlu0 %1255
    %v1257 = vsel %vm443, %v1252, %v1254
    %v1258 = vsel %vm443, %v1254, %v1256
    %v1259 = vsel %vm83, %v1257, 0
    %v1261 = vsel %vm83, %v1258, 0
    %1263 = vmatprep.subr.mxu0 0.0
    %1264 = vmatpush1.msra.mxu0 0.0
    %1265 = vmatprep.subr.mxu0 0.0
    %1266 = vmatpush1.msra.mxu0 0.0
    %1267 = vmatprep.subr.mxu0 0.0
    %1268 = vmatpush1.msra.mxu0 0.0
    %1269 = vmatprep.subr.mxu0 0.0
    %1270 = vmatpush1.msra.mxu0 0.0
    %1271 = vmatprep.subr.mxu0 0.0
    %1272 = vmatpush1.msra.mxu0 0.0
    %1273 = vmatprep.subr.mxu0 0.0
    %1274 = vmatpush1.msra.mxu0 0.0
    %1275 = vmatprep.subr.mxu0 0.0
    %1276 = vmatpush1.msra.mxu0 0.0
    %1277 = vmatprep.subr.mxu0 0.0
    %1278 = vmatpush1.msra.mxu0 0.0
    %1279 = vmatprep.subr.mxu0 0.0
    %1280 = vmatpush1.msra.mxu0 0.0
    %1281 = vmatprep.subr.mxu0 0.0
    %1282 = vmatpush1.msra.mxu0 0.0
    %1283 = vmatprep.subr.mxu0 0.0
    %1284 = vmatpush1.msra.mxu0 0.0
    %1285 = vmatprep.subr.mxu0 0.0
    %1286 = vmatpush1.msra.mxu0 0.0
    %1287 = vmatprep.subr.mxu0 0.0
    %1288 = vmatpush1.msra.mxu0 0.0
    %1289 = vmatprep.subr.mxu0 0.0
    %1290 = vmatpush1.msra.mxu0 0.0
    %1291 = vmatprep.subr.mxu0 0.0
    %1292 = vmatpush1.msra.mxu0 0.0
    %1293 = vmatprep.subr.mxu0 %v1261
    %1294 = vmatpush1.msra.mxu0 %v1259
    %1295 = vmatprep.subr.mxu0 0.0
    %1296 = vmatpush2.msra.mxu0 0.0
    %1297 = vmatprep.subr.mxu0 0.0
    %1298 = vmatpush2.msra.mxu0 0.0
    %1299 = vmatprep.subr.mxu0 0.0
    %1300 = vmatpush2.msra.mxu0 0.0
    %1301 = vmatprep.subr.mxu0 0.0
    %1302 = vmatpush2.msra.mxu0 0.0
    %1303 = vmatprep.subr.mxu0 0.0
    %1304 = vmatpush2.msra.mxu0 0.0
    %1305 = vmatprep.subr.mxu0 0.0
    %1306 = vmatpush2.msra.mxu0 0.0
    %1307 = vmatprep.subr.mxu0 0.0
    %1308 = vmatpush2.msra.mxu0 0.0
    %1309 = vmatprep.subr.mxu0 0.0
    %1310 = vmatpush2.msra.mxu0 0.0
    %1311 = vmatprep.subr.mxu0 0.0
    %1312 = vmatpush2.msra.mxu0 0.0
    %1313 = vmatprep.subr.mxu0 0.0
    %1314 = vmatpush2.msra.mxu0 0.0
    %1315 = vmatprep.subr.mxu0 0.0
    %1316 = vmatpush2.msra.mxu0 0.0
    %1317 = vmatprep.subr.mxu0 0.0
    %1318 = vmatpush2.msra.mxu0 0.0
    %1319 = vmatprep.subr.mxu0 0.0
    %1320 = vmatpush2.msra.mxu0 0.0
    %1321 = vmatprep.subr.mxu0 0.0
    %1322 = vmatpush2.msra.mxu0 0.0
    %1323 = vmatprep.subr.mxu0 0.0
    %1324 = vmatpush2.msra.mxu0 0.0
    %1325 = vmatprep.subr.mxu0 0.0
    %1326 = vmatpush2.msra.mxu0 0.0
    %1327 = vmatprep.mubr.f32.mxu0 0.0
    %1328 = vmatmul.mubr.f32.gmra.mxu0 %v447
    %v1329 = vpop.f32.mrf.mxu0
    %v1330 = vadd.f32 0.0, %v1329
    %v1331 = vpop.f32.mrf.mxu0
    %v1332 = vadd.f32 0.0, %v1331
    %1333 = vdwg.mxu0
    %v1334 = vadd.f32 %v1249, %v1330
    %v1335 = vadd.f32 %v1250, %v1332
    %1336 = vrot.lane.b32.xlu0 %v901, 110
    %v1337 = vpop.permute.xlu0 %1336
    %1338 = vrot.lane.b32.xlu0 %v904, 110
    %v1339 = vpop.permute.xlu0 %1338
    %1340 = vrot.lane.b32.xlu0 %v902, 110
    %v1341 = vpop.permute.xlu0 %1340
    %v1342 = vsel %vm532, %v1337, %v1339
    %v1343 = vsel %vm532, %v1339, %v1341
    %v1346 = vsel %vm245, %v1342, 0.0
    %v1347 = vsel %vm246, %v1343, 0.0
    %v1349 = vsel %vm83, %v1346, 0
    %v1352 = vsel %vm83, %v1347, 0
    %1354 = vmatprep.subr.mxu0 0.0
    %1355 = vmatpush1.msra.mxu0 0.0
    %1356 = vmatprep.subr.mxu0 0.0
    %1357 = vmatpush1.msra.mxu0 0.0
    %1358 = vmatprep.subr.mxu0 0.0
    %1359 = vmatpush1.msra.mxu0 0.0
    %1360 = vmatprep.subr.mxu0 0.0
    %1361 = vmatpush1.msra.mxu0 0.0
    %1362 = vmatprep.subr.mxu0 0.0
    %1363 = vmatpush1.msra.mxu0 0.0
    %1364 = vmatprep.subr.mxu0 0.0
    %1365 = vmatpush1.msra.mxu0 0.0
    %1366 = vmatprep.subr.mxu0 0.0
    %1367 = vmatpush1.msra.mxu0 0.0
    %1368 = vmatprep.subr.mxu0 0.0
    %1369 = vmatpush1.msra.mxu0 0.0
    %1370 = vmatprep.subr.mxu0 0.0
    %1371 = vmatpush1.msra.mxu0 0.0
    %1372 = vmatprep.subr.mxu0 0.0
    %1373 = vmatpush1.msra.mxu0 0.0
    %1374 = vmatprep.subr.mxu0 0.0
    %1375 = vmatpush1.msra.mxu0 0.0
    %1376 = vmatprep.subr.mxu0 0.0
    %1377 = vmatpush1.msra.mxu0 0.0
    %1378 = vmatprep.subr.mxu0 0.0
    %1379 = vmatpush1.msra.mxu0 0.0
    %1380 = vmatprep.subr.mxu0 0.0
    %1381 = vmatpush1.msra.mxu0 0.0
    %1382 = vmatprep.subr.mxu0 0.0
    %1383 = vmatpush1.msra.mxu0 0.0
    %1384 = vmatprep.subr.mxu0 %v1352
    %1385 = vmatpush1.msra.mxu0 %v1349
    %1386 = vmatprep.subr.mxu0 0.0
    %1387 = vmatpush2.msra.mxu0 0.0
    %1388 = vmatprep.subr.mxu0 0.0
    %1389 = vmatpush2.msra.mxu0 0.0
    %1390 = vmatprep.subr.mxu0 0.0
    %1391 = vmatpush2.msra.mxu0 0.0
    %1392 = vmatprep.subr.mxu0 0.0
    %1393 = vmatpush2.msra.mxu0 0.0
    %1394 = vmatprep.subr.mxu0 0.0
    %1395 = vmatpush2.msra.mxu0 0.0
    %1396 = vmatprep.subr.mxu0 0.0
    %1397 = vmatpush2.msra.mxu0 0.0
    %1398 = vmatprep.subr.mxu0 0.0
    %1399 = vmatpush2.msra.mxu0 0.0
    %1400 = vmatprep.subr.mxu0 0.0
    %1401 = vmatpush2.msra.mxu0 0.0
    %1402 = vmatprep.subr.mxu0 0.0
    %1403 = vmatpush2.msra.mxu0 0.0
    %1404 = vmatprep.subr.mxu0 0.0
    %1405 = vmatpush2.msra.mxu0 0.0
    %1406 = vmatprep.subr.mxu0 0.0
    %1407 = vmatpush2.msra.mxu0 0.0
    %1408 = vmatprep.subr.mxu0 0.0
    %1409 = vmatpush2.msra.mxu0 0.0
    %1410 = vmatprep.subr.mxu0 0.0
    %1411 = vmatpush2.msra.mxu0 0.0
    %1412 = vmatprep.subr.mxu0 0.0
    %1413 = vmatpush2.msra.mxu0 0.0
    %1414 = vmatprep.subr.mxu0 0.0
    %1415 = vmatpush2.msra.mxu0 0.0
    %1416 = vmatprep.subr.mxu0 0.0
    %1417 = vmatpush2.msra.mxu0 0.0
    %1418 = vmatprep.mubr.f32.mxu0 0.0
    %1419 = vmatmul.mubr.f32.gmra.mxu0 %v540
    %v1420 = vpop.f32.mrf.mxu0
    %v1421 = vadd.f32 0.0, %v1420
    %v1422 = vpop.f32.mrf.mxu0
    %v1423 = vadd.f32 0.0, %v1422
    %1424 = vdwg.mxu0
    %v1425 = vadd.f32 %v1334, %v1421
    %v1426 = vadd.f32 %v1335, %v1423
    %1427 = vrot.lane.b32.xlu0 %v901, 96
    %v1428 = vpop.permute.xlu0 %1427
    %1429 = vrot.lane.b32.xlu0 %v904, 96
    %v1430 = vpop.permute.xlu0 %1429
    %1431 = vrot.lane.b32.xlu0 %v902, 96
    %v1432 = vpop.permute.xlu0 %1431
    %v1433 = vsel %vm627, %v1428, %v1430
    %v1434 = vsel %vm627, %v1430, %v1432
    %v1437 = vsel %vm62, %v1433, 0.0
    %v1438 = vsel %vm63, %v1434, 0.0
    %v1440 = vsel %vm83, %v1437, 0
    %v1443 = vsel %vm83, %v1438, 0
    %1445 = vmatprep.subr.mxu0 0.0
    %1446 = vmatpush1.msra.mxu0 0.0
    %1447 = vmatprep.subr.mxu0 0.0
    %1448 = vmatpush1.msra.mxu0 0.0
    %1449 = vmatprep.subr.mxu0 0.0
    %1450 = vmatpush1.msra.mxu0 0.0
    %1451 = vmatprep.subr.mxu0 0.0
    %1452 = vmatpush1.msra.mxu0 0.0
    %1453 = vmatprep.subr.mxu0 0.0
    %1454 = vmatpush1.msra.mxu0 0.0
    %1455 = vmatprep.subr.mxu0 0.0
    %1456 = vmatpush1.msra.mxu0 0.0
    %1457 = vmatprep.subr.mxu0 0.0
    %1458 = vmatpush1.msra.mxu0 0.0
    %1459 = vmatprep.subr.mxu0 0.0
    %1460 = vmatpush1.msra.mxu0 0.0
    %1461 = vmatprep.subr.mxu0 0.0
    %1462 = vmatpush1.msra.mxu0 0.0
    %1463 = vmatprep.subr.mxu0 0.0
    %1464 = vmatpush1.msra.mxu0 0.0
    %1465 = vmatprep.subr.mxu0 0.0
    %1466 = vmatpush1.msra.mxu0 0.0
    %1467 = vmatprep.subr.mxu0 0.0
    %1468 = vmatpush1.msra.mxu0 0.0
    %1469 = vmatprep.subr.mxu0 0.0
    %1470 = vmatpush1.msra.mxu0 0.0
    %1471 = vmatprep.subr.mxu0 0.0
    %1472 = vmatpush1.msra.mxu0 0.0
    %1473 = vmatprep.subr.mxu0 0.0
    %1474 = vmatpush1.msra.mxu0 0.0
    %1475 = vmatprep.subr.mxu0 %v1443
    %1476 = vmatpush1.msra.mxu0 %v1440
    %1477 = vmatprep.subr.mxu0 0.0
    %1478 = vmatpush2.msra.mxu0 0.0
    %1479 = vmatprep.subr.mxu0 0.0
    %1480 = vmatpush2.msra.mxu0 0.0
    %1481 = vmatprep.subr.mxu0 0.0
    %1482 = vmatpush2.msra.mxu0 0.0
    %1483 = vmatprep.subr.mxu0 0.0
    %1484 = vmatpush2.msra.mxu0 0.0
    %1485 = vmatprep.subr.mxu0 0.0
    %1486 = vmatpush2.msra.mxu0 0.0
    %1487 = vmatprep.subr.mxu0 0.0
    %1488 = vmatpush2.msra.mxu0 0.0
    %1489 = vmatprep.subr.mxu0 0.0
    %1490 = vmatpush2.msra.mxu0 0.0
    %1491 = vmatprep.subr.mxu0 0.0
    %1492 = vmatpush2.msra.mxu0 0.0
    %1493 = vmatprep.subr.mxu0 0.0
    %1494 = vmatpush2.msra.mxu0 0.0
    %1495 = vmatprep.subr.mxu0 0.0
    %1496 = vmatpush2.msra.mxu0 0.0
    %1497 = vmatprep.subr.mxu0 0.0
    %1498 = vmatpush2.msra.mxu0 0.0
    %1499 = vmatprep.subr.mxu0 0.0
    %1500 = vmatpush2.msra.mxu0 0.0
    %1501 = vmatprep.subr.mxu0 0.0
    %1502 = vmatpush2.msra.mxu0 0.0
    %1503 = vmatprep.subr.mxu0 0.0
    %1504 = vmatpush2.msra.mxu0 0.0
    %1505 = vmatprep.subr.mxu0 0.0
    %1506 = vmatpush2.msra.mxu0 0.0
    %1507 = vmatprep.subr.mxu0 0.0
    %1508 = vmatpush2.msra.mxu0 0.0
    %1509 = vmatprep.mubr.f32.mxu0 0.0
    %1510 = vmatmul.mubr.f32.gmra.mxu0 %v635
    %v1511 = vpop.f32.mrf.mxu0
    %v1512 = vadd.f32 0.0, %v1511
    %v1513 = vpop.f32.mrf.mxu0
    %v1514 = vadd.f32 0.0, %v1513
    %1515 = vdwg.mxu0
    %v1516 = vadd.f32 %v1425, %v1512
    %v1517 = vadd.f32 %v1426, %v1514
    %1518 = vrot.lane.b32.xlu0 %v901, 95
    %v1519 = vpop.permute.xlu0 %1518
    %1520 = vrot.lane.b32.xlu0 %v904, 95
    %v1521 = vpop.permute.xlu0 %1520
    %1522 = vrot.lane.b32.xlu0 %v902, 95
    %v1523 = vpop.permute.xlu0 %1522
    %v1524 = vsel %vm722, %v1519, %v1521
    %v1525 = vsel %vm722, %v1521, %v1523
    %v1526 = vsel %vm83, %v1524, 0
    %v1528 = vsel %vm83, %v1525, 0
    %1530 = vmatprep.subr.mxu0 0.0
    %1531 = vmatpush1.msra.mxu0 0.0
    %1532 = vmatprep.subr.mxu0 0.0
    %1533 = vmatpush1.msra.mxu0 0.0
    %1534 = vmatprep.subr.mxu0 0.0
    %1535 = vmatpush1.msra.mxu0 0.0
    %1536 = vmatprep.subr.mxu0 0.0
    %1537 = vmatpush1.msra.mxu0 0.0
    %1538 = vmatprep.subr.mxu0 0.0
    %1539 = vmatpush1.msra.mxu0 0.0
    %1540 = vmatprep.subr.mxu0 0.0
    %1541 = vmatpush1.msra.mxu0 0.0
    %1542 = vmatprep.subr.mxu0 0.0
    %1543 = vmatpush1.msra.mxu0 0.0
    %1544 = vmatprep.subr.mxu0 0.0
    %1545 = vmatpush1.msra.mxu0 0.0
    %1546 = vmatprep.subr.mxu0 0.0
    %1547 = vmatpush1.msra.mxu0 0.0
    %1548 = vmatprep.subr.mxu0 0.0
    %1549 = vmatpush1.msra.mxu0 0.0
    %1550 = vmatprep.subr.mxu0 0.0
    %1551 = vmatpush1.msra.mxu0 0.0
    %1552 = vmatprep.subr.mxu0 0.0
    %1553 = vmatpush1.msra.mxu0 0.0
    %1554 = vmatprep.subr.mxu0 0.0
    %1555 = vmatpush1.msra.mxu0 0.0
    %1556 = vmatprep.subr.mxu0 0.0
    %1557 = vmatpush1.msra.mxu0 0.0
    %1558 = vmatprep.subr.mxu0 0.0
    %1559 = vmatpush1.msra.mxu0 0.0
    %1560 = vmatprep.subr.mxu0 %v1528
    %1561 = vmatpush1.msra.mxu0 %v1526
    %1562 = vmatprep.subr.mxu0 0.0
    %1563 = vmatpush2.msra.mxu0 0.0
    %1564 = vmatprep.subr.mxu0 0.0
    %1565 = vmatpush2.msra.mxu0 0.0
    %1566 = vmatprep.subr.mxu0 0.0
    %1567 = vmatpush2.msra.mxu0 0.0
    %1568 = vmatprep.subr.mxu0 0.0
    %1569 = vmatpush2.msra.mxu0 0.0
    %1570 = vmatprep.subr.mxu0 0.0
    %1571 = vmatpush2.msra.mxu0 0.0
    %1572 = vmatprep.subr.mxu0 0.0
    %1573 = vmatpush2.msra.mxu0 0.0
    %1574 = vmatprep.subr.mxu0 0.0
    %1575 = vmatpush2.msra.mxu0 0.0
    %1576 = vmatprep.subr.mxu0 0.0
    %1577 = vmatpush2.msra.mxu0 0.0
    %1578 = vmatprep.subr.mxu0 0.0
    %1579 = vmatpush2.msra.mxu0 0.0
    %1580 = vmatprep.subr.mxu0 0.0
    %1581 = vmatpush2.msra.mxu0 0.0
    %1582 = vmatprep.subr.mxu0 0.0
    %1583 = vmatpush2.msra.mxu0 0.0
    %1584 = vmatprep.subr.mxu0 0.0
    %1585 = vmatpush2.msra.mxu0 0.0
    %1586 = vmatprep.subr.mxu0 0.0
    %1587 = vmatpush2.msra.mxu0 0.0
    %1588 = vmatprep.subr.mxu0 0.0
    %1589 = vmatpush2.msra.mxu0 0.0
    %1590 = vmatprep.subr.mxu0 0.0
    %1591 = vmatpush2.msra.mxu0 0.0
    %1592 = vmatprep.subr.mxu0 0.0
    %1593 = vmatpush2.msra.mxu0 0.0
    %1594 = vmatprep.mubr.f32.mxu0 0.0
    %1595 = vmatmul.mubr.f32.gmra.mxu0 %v726
    %v1596 = vpop.f32.mrf.mxu0
    %v1597 = vadd.f32 0.0, %v1596
    %v1598 = vpop.f32.mrf.mxu0
    %v1599 = vadd.f32 0.0, %v1598
    %1600 = vdwg.mxu0
    %v1601 = vadd.f32 %v1516, %v1597
    %v1602 = vadd.f32 %v1517, %v1599
    %1603 = vrot.lane.b32.xlu0 %v901, 94
    %v1604 = vpop.permute.xlu0 %1603
    %1605 = vrot.lane.b32.xlu0 %v904, 94
    %v1606 = vpop.permute.xlu0 %1605
    %1607 = vrot.lane.b32.xlu0 %v902, 94
    %v1608 = vpop.permute.xlu0 %1607
    %v1609 = vsel %vm811, %v1604, %v1606
    %v1610 = vsel %vm811, %v1606, %v1608
    %v1613 = vsel %vm245, %v1609, 0.0
    %v1614 = vsel %vm246, %v1610, 0.0
    %v1616 = vsel %vm83, %v1613, 0
    %v1619 = vsel %vm83, %v1614, 0
    %1621 = vmatprep.subr.mxu0 0.0
    %1622 = vmatpush1.msra.mxu0 0.0
    %1623 = vmatprep.subr.mxu0 0.0
    %1624 = vmatpush1.msra.mxu0 0.0
    %1625 = vmatprep.subr.mxu0 0.0
    %1626 = vmatpush1.msra.mxu0 0.0
    %1627 = vmatprep.subr.mxu0 0.0
    %1628 = vmatpush1.msra.mxu0 0.0
    %1629 = vmatprep.subr.mxu0 0.0
    %1630 = vmatpush1.msra.mxu0 0.0
    %1631 = vmatprep.subr.mxu0 0.0
    %1632 = vmatpush1.msra.mxu0 0.0
    %1633 = vmatprep.subr.mxu0 0.0
    %1634 = vmatpush1.msra.mxu0 0.0
    %1635 = vmatprep.subr.mxu0 0.0
    %1636 = vmatpush1.msra.mxu0 0.0
    %1637 = vmatprep.subr.mxu0 0.0
    %1638 = vmatpush1.msra.mxu0 0.0
    %1639 = vmatprep.subr.mxu0 0.0
    %1640 = vmatpush1.msra.mxu0 0.0
    %1641 = vmatprep.subr.mxu0 0.0
    %1642 = vmatpush1.msra.mxu0 0.0
    %1643 = vmatprep.subr.mxu0 0.0
    %1644 = vmatpush1.msra.mxu0 0.0
    %1645 = vmatprep.subr.mxu0 0.0
    %1646 = vmatpush1.msra.mxu0 0.0
    %1647 = vmatprep.subr.mxu0 0.0
    %1648 = vmatpush1.msra.mxu0 0.0
    %1649 = vmatprep.subr.mxu0 0.0
    %1650 = vmatpush1.msra.mxu0 0.0
    %1651 = vmatprep.subr.mxu0 %v1619
    %1652 = vmatpush1.msra.mxu0 %v1616
    %1653 = vmatprep.subr.mxu0 0.0
    %1654 = vmatpush2.msra.mxu0 0.0
    %1655 = vmatprep.subr.mxu0 0.0
    %1656 = vmatpush2.msra.mxu0 0.0
    %1657 = vmatprep.subr.mxu0 0.0
    %1658 = vmatpush2.msra.mxu0 0.0
    %1659 = vmatprep.subr.mxu0 0.0
    %1660 = vmatpush2.msra.mxu0 0.0
    %1661 = vmatprep.subr.mxu0 0.0
    %1662 = vmatpush2.msra.mxu0 0.0
    %1663 = vmatprep.subr.mxu0 0.0
    %1664 = vmatpush2.msra.mxu0 0.0
    %1665 = vmatprep.subr.mxu0 0.0
    %1666 = vmatpush2.msra.mxu0 0.0
    %1667 = vmatprep.subr.mxu0 0.0
    %1668 = vmatpush2.msra.mxu0 0.0
    %1669 = vmatprep.subr.mxu0 0.0
    %1670 = vmatpush2.msra.mxu0 0.0
    %1671 = vmatprep.subr.mxu0 0.0
    %1672 = vmatpush2.msra.mxu0 0.0
    %1673 = vmatprep.subr.mxu0 0.0
    %1674 = vmatpush2.msra.mxu0 0.0
    %1675 = vmatprep.subr.mxu0 0.0
    %1676 = vmatpush2.msra.mxu0 0.0
    %1677 = vmatprep.subr.mxu0 0.0
    %1678 = vmatpush2.msra.mxu0 0.0
    %1679 = vmatprep.subr.mxu0 0.0
    %1680 = vmatpush2.msra.mxu0 0.0
    %1681 = vmatprep.subr.mxu0 0.0
    %1682 = vmatpush2.msra.mxu0 0.0
    %1683 = vmatprep.subr.mxu0 0.0
    %1684 = vmatpush2.msra.mxu0 0.0
    %1685 = vmatprep.mubr.f32.mxu0 0.0
    %1686 = vmatmul.mubr.f32.gmra.mxu0 %v819
    %v1687 = vpop.f32.mrf.mxu0
    %v1688 = vadd.f32 0.0, %v1687
    %v1689 = vpop.f32.mrf.mxu0
    %v1690 = vadd.f32 0.0, %v1689
    %1691 = vdwg.mxu0
    %v1692 = vadd.f32 %v1601, %v1688
    %v1693 = vadd.f32 %v1602, %v1690
    %v1694 = vadd.f32 %v898, %v899
    %1695 = vadd.xlane.f32.xlu0 %v1694
    %v1696 = vpop.xlane.xlu0 %1695
    %v1697 = vadd.f32 %v1696, 0.0
    %v1698 = vadd.f32 %v1692, %v1693
    %1699 = vadd.xlane.f32.xlu0 %v1698
    %v1700 = vpop.xlane.xlu0 %1699
    %v1701 = vadd.f32 %v1697, %v1700
    %v1702 = vrcp.pop 512.0
    %v1703 = vmul.f32 %v1701, %v1702
    %v1704 = vsub.f32 %v898, %v1703
    %v1705 = vsub.f32 %v899, %v1703
    %v1706 = vmul.f32 %v1704, %v1704
    %v1707 = vmul.f32 %v1705, %v1705
    %v1708 = vadd.f32 %v1706, %v1707
    %1709 = vadd.xlane.f32.xlu0 %v1708
    %v1710 = vpop.xlane.xlu0 %1709
    %v1711 = vadd.f32 %v1710, 0.0
    %v1712 = vsub.f32 %v1692, %v1703
    %v1713 = vsub.f32 %v1693, %v1703
    %v1714 = vmul.f32 %v1712, %v1712
    %v1715 = vmul.f32 %v1713, %v1713
    %v1716 = vadd.f32 %v1714, %v1715
    %1717 = vadd.xlane.f32.xlu0 %v1716
    %v1718 = vpop.xlane.xlu0 %1717
    %v1719 = vadd.f32 %v1711, %v1718
    %v1720 = vmul.f32 %v1719, %v1702
    %v1721 = vadd.f32 %v1720, 1e-05
    %v1722 = vrsqrt.pop %v1721
    %v1723 = vld [vmem:[%s2] sm:$0xff]
    %v1724 = vmul.f32 %v1723, %v1722
    %v1725 = vld [vmem:[%s3] sm:$0xff]
    %v1726 = vmul.f32 %v1703, %v1724
    %v1727 = vsub.f32 %v1725, %v1726
    %1729 = vset.pattern.permute.xlu0 0
    %1730 = vperm.xlu0 %1729, %v1724
    %v1731 = vpop.permute.xlu0 %1730
    %v1733 = vmul.f32 %v898, %v1731
    %v1734 = vmul.f32 %v899, %v1731
    %1736 = vset.pattern.permute.xlu0 0
    %1737 = vperm.xlu0 %1736, %v1727
    %v1738 = vpop.permute.xlu0 %1737
    %v1740 = vadd.f32 %v1733, %v1738
    %v1741 = vadd.f32 %v1734, %v1738
    %vm1742 = vcmp.ge.f32.partialorder %v1740, 0.0
    %vm1743 = vcmp.ge.f32.partialorder %v1741, 0.0
    %v1744 = vmul.f32 %v1740, 0.01
    %v1745 = vmul.f32 %v1741, 0.01
    %v1746 = vsel %vm1742, %v1740, %v1744
    %v1747 = vsel %vm1743, %v1741, %v1745
    %1748 = vst [vmem:[#allocation2] sm:$0xff] %v1746
    %1749 = vst [vmem:[#allocation2 + $0x8] sm:$0xff] %v1747
    %v1750 = vmul.f32 %v1692, %v1731
    %v1751 = vmul.f32 %v1693, %v1731
    %v1752 = vadd.f32 %v1750, %v1738
    %v1753 = vadd.f32 %v1751, %v1738
    %vm1754 = vcmp.ge.f32.partialorder %v1752, 0.0
    %vm1755 = vcmp.ge.f32.partialorder %v1753, 0.0
    %v1756 = vmul.f32 %v1752, 0.01
    %v1757 = vmul.f32 %v1753, 0.01
    %v1758 = vsel %vm1754, %v1752, %v1756
    %v1759 = vsel %vm1755, %v1753, %v1757
    %s1760 = scalar_lea.vmem [#allocation2], 16
    %1761 = vst [vmem:[%s1760] sm:$0xff] %v1758
    %1762 = vst [vmem:[%s1760 + $0x8] sm:$0xff] %v1759
    // Predicated region
    $region18: #{tpu_custom_call.1} parent=1 // pred_check
      _
    $region19: #{tpu_custom_call.1} parent=1 // pred_check_branch
      %1764 = sbr.rel (0) target = $region21
    $region20: #{tpu_custom_call.1} parent=1 // pred_region
      %s1766 = ssub.s32 512, 512
      %1767 = vsyncadd [#allocation3], %s1766
      %s1768 = sshll.u32 [#allocation2], 4
      %s1769 = int_to_ptr.vmem [resolvable:$true] %s1768
      %1774 = dma.vmem_to_hbm [thread:$0]  %s1769, 512, %s4, [#allocation3], 256, 256, 16
    $region21: #{tpu_custom_call.1} parent=1 // pred_fallthru
      _
    // Predicated region
    $region22: #{tpu_custom_call.1} parent=1 // pred_check
      _
    $region23: #{tpu_custom_call.1} parent=1 // pred_check_branch
      %1776 = sbr.rel (0) target = $region25
    $region24: #{tpu_custom_call.1} parent=1 // pred_region
      %1777 = dma.done [#allocation3], 512
    $region25: #{tpu_custom_call.1} parent=1 // pred_fallthru
      _
    %1778 = vsyncpa [#allocation3], 1

</llo_original>
